<compile_context>
chip_gen: v7x
topology: tpu7x:2x2x1
jax: 0.10.0
libtpu: 0.0.40
codegen_flags: <defaults>
</compile_context>

<pallas_src>
import jax
import jax.numpy as jnp
from jax import lax
from jax.experimental import pallas as pl
from jax.experimental.pallas import tpu as pltpu

EPS = 1e-5  # PyTorch InstanceNorm2d default eps


# ------------------------------------------------------------------- kernel --
def _make_rev_block_kernel(C2, H, W):
    """Fused kernel for one sample: y1 = x1 + F(x2); y2 = x2 + G(y1)."""
    HW = H * W

    def kernel(x_ref, mask_ref, wf1_ref, wf2_ref, wg1_ref, wg2_ref, out_ref,
               p_ref, ey_ref, ex_ref):
        # Column-boundary masks (built on host): nonzero where x == 0 / W-1.
        lmask = mask_ref[0] != 0.0          # (C2, HW)
        rmask = mask_ref[1] != 0.0          # (C2, HW)

        def conv3x3_reflect(src, w_ref):
            """src: (C2, HW) f32 -> (C2, HW) f32 conv output (pre-norm)."""
            # Vertically extended copy: rows [-1, 0..H-1, H] with reflection,
            # so a row shift dy in {-1,0,+1} becomes a plain static lane slice.
            ey_ref[:, W:W + HW] = src
            ey_ref[:, 0:W] = src[:, W:2 * W]                           # row -1 = row 1
            ey_ref[:, (H + 1) * W:(H + 2) * W] = src[:, (H - 2) * W:(H - 1) * W]
            for ky in range(3):                                        # dy = ky - 1
                ay = ey_ref[:, ky * W:ky * W + HW]                     # rows shifted by dy
                # Horizontally extended row buffer for the dx = +-1 shifts.
                ex_ref[:, 1:HW + 1] = ay
                ex_ref[:, 0:1] = ay[:, 0:1]
                ex_ref[:, HW + 1:HW + 2] = ay[:, HW - 1:HW]
                for kx in range(3):                                    # dx = kx - 1
                    dx = kx - 1
                    if dx == 0:
                        tap = ay
                    else:
                        fwd = ex_ref[:, 1 + dx:1 + dx + HW]            # ay[k + dx]
                        bwd = ex_ref[:, 1 - dx:1 - dx + HW]            # ay[k - dx] (reflect)
                        tap = jnp.where(lmask if dx < 0 else rmask, bwd, fwd)
                    t = ky * 3 + kx
                    p_ref[t * C2:(t + 1) * C2, :] = tap                # pack patch rows
            # Single folded matmul: (C2, 9*C2) @ (9*C2, HW) -> (C2, HW).
            return jnp.dot(w_ref[...], p_ref[...],
                           preferred_element_type=jnp.float32)

        def instance_norm(a, relu):
            # Per-channel (sublane) stats over HW (lanes), single pass, f32.
            s = jnp.sum(a, axis=1, keepdims=True)
            ss = jnp.sum(a * a, axis=1, keepdims=True)
            mean = s * (1.0 / HW)
            var = jnp.maximum(ss * (1.0 / HW) - mean * mean, 0.0)
            y = (a - mean) * lax.rsqrt(var + EPS)
            return jnp.maximum(y, 0.0) if relu else y

        def coupling_branch(src, w1_ref, w2_ref, skip):
            # conv -> IN -> ReLU -> conv -> IN, then additive skip (no bias:
            # it is cancelled exactly by the mean subtraction in IN).
            h = instance_norm(conv3x3_reflect(src, w1_ref), relu=True)
            return skip + instance_norm(conv3x3_reflect(h, w2_ref), relu=False)

        xv = x_ref[0]                       # (2*C2, HW)
        x1 = xv[0:C2]
        x2 = xv[C2:2 * C2]
        y1 = coupling_branch(x2, wf1_ref, wf2_ref, x1)   # y1 = x1 + F(x2)
        y2 = coupling_branch(y1, wg1_ref, wg2_ref, x2)   # y2 = x2 + G(y1)
        out_ref[0, 0:C2, :] = y1.astype(out_ref.dtype)
        out_ref[0, C2:2 * C2, :] = y2.astype(out_ref.dtype)

    return kernel


# -------------------------------------------------------------- JAX wrapper --
def _fold_weight(w):
    """(9, Cin, Cout) tap-major conv weight -> (Cout, 9*Cin) for the kernel."""
    t, cin, cout = w.shape
    return jnp.transpose(w, (2, 0, 1)).reshape(cout, t * cin)


def reversible_resnet_block(x_nchw, paramsF, paramsG):
    """Full ReversibleResnetBlock forward.  x: (N, C, H, W) -> (N, C, H, W)."""
    N, C, H, W = x_nchw.shape
    C2 = C // 2
    HW = H * W

    wf1, _, wf2, _ = paramsF    # biases are mathematically cancelled by
    wg1, _, wg2, _ = paramsG    # InstanceNorm(affine=False) -> not sent to kernel
    wf1, wf2 = _fold_weight(wf1), _fold_weight(wf2)
    wg1, wg2 = _fold_weight(wg1), _fold_weight(wg2)

    # Column-boundary masks for the horizontal reflect shifts.
    col = jnp.arange(HW, dtype=jnp.int32) % W
    masks = jnp.stack([
        jnp.broadcast_to(col == 0, (C2, HW)),
        jnp.broadcast_to(col == W - 1, (C2, HW)),
    ]).astype(jnp.float32)                                  # (2, C2, HW)

    x_flat = x_nchw.reshape(N, C, HW)                       # free reshape (NCHW)

    out_flat = pl.pallas_call(
        _make_rev_block_kernel(C2, H, W),
        out_shape=jax.ShapeDtypeStruct((N, C, HW), jnp.float32),
        grid=(N,),
        in_specs=[
            pl.BlockSpec((1, C, HW), lambda n: (n, 0, 0)),
            pl.BlockSpec((2, C2, HW), lambda n: (0, 0, 0)),
            pl.BlockSpec((C2, 9 * C2), lambda n: (0, 0)),
            pl.BlockSpec((C2, 9 * C2), lambda n: (0, 0)),
            pl.BlockSpec((C2, 9 * C2), lambda n: (0, 0)),
            pl.BlockSpec((C2, 9 * C2), lambda n: (0, 0)),
        ],
        out_specs=pl.BlockSpec((1, C, HW), lambda n: (n, 0, 0)),
        scratch_shapes=[
            pltpu.VMEM((9 * C2, HW), jnp.float32),          # packed 3x3 patches
            pltpu.VMEM((C2, (H + 2) * W), jnp.float32),     # vertically extended image
            pltpu.VMEM((C2, HW + 2), jnp.float32),          # horizontally extended rows
        ],
        compiler_params=pltpu.CompilerParams(dimension_semantics=("parallel",)),
    )(x_flat, masks, wf1, wf2, wg1, wg2)

    return out_flat.reshape(N, C, H, W)
    # TODO(synk): inverse() of the reversible block is not implemented (forward only).


# --------------------------------------------------------- pure-JAX reference --
def _conv_in_ref(x, w, b, relu):
    xp = jnp.pad(x, ((0, 0), (1, 1), (1, 1), (0, 0)), mode="reflect")
    w_hwio = w.reshape(3, 3, w.shape[1], w.shape[2])
    y = lax.conv_general_dilated(
        xp, w_hwio, (1, 1), "VALID", dimension_numbers=("NHWC", "HWIO", "NHWC")
    )
    y = y + b.reshape(1, 1, 1, -1)   # reference keeps the bias (IN cancels it)
    m = jnp.mean(y, axis=(1, 2), keepdims=True)
    v = jnp.mean((y - m) ** 2, axis=(1, 2), keepdims=True)
    y = (y - m) * lax.rsqrt(v + EPS)
    return jnp.maximum(y, 0.0) if relu else y


def _conv_block_ref(x, params, skip):
    w1, b1, w2, b2 = params
    h = _conv_in_ref(x, w1, b1, relu=True)
    return skip + _conv_in_ref(h, w2, b2, relu=False)


# ------------------------------------------------------------------------ main
if __name__ == "__main__":
    N, C, H, W = 2, 8, 16, 16  # dim=8 -> each coupling branch has dim//2=4 ch
    C2 = C // 2

    key = jax.random.PRNGKey(0)
    keys = jax.random.split(key, 3)
    x = jax.random.normal(keys[0], (N, C, H, W), jnp.float32)

    def make_params(k):
        ks = jax.random.split(k, 4)
        w1 = 0.2 * jax.random.normal(ks[0], (9, C2, C2), jnp.float32)
        b1 = 0.1 * jax.random.normal(ks[1], (1, C2), jnp.float32)
        w2 = 0.2 * jax.random.normal(ks[2], (9, C2, C2), jnp.float32)
        b2 = 0.1 * jax.random.normal(ks[3], (1, C2), jnp.float32)
        return (w1, b1, w2, b2)

    paramsF = make_params(keys[1])
    paramsG = make_params(keys[2])

    out = jax.jit(reversible_resnet_block)(x, paramsF, paramsG)
    out = jax.block_until_ready(out)

    # correctness check against a pure-JAX reference (which includes the bias)
    xh = jnp.transpose(x, (0, 2, 3, 1))
    x1, x2 = xh[..., :C2], xh[..., C2:]
    y1 = _conv_block_ref(x2, paramsF, x1)
    y2 = _conv_block_ref(y1, paramsG, x2)
    ref = jnp.transpose(jnp.concatenate([y1, y2], axis=-1), (0, 3, 1, 2))

    assert out.shape == (N, C, H, W) and out.dtype == jnp.float32
    err = float(jnp.max(jnp.abs(out - ref)))
    assert jnp.allclose(out, ref, atol=1e-4, rtol=1e-4), f"max abs err = {err}"

    print("KERNEL_OK")
</pallas_src>

<mosaic_0001>
module attributes {stable_mosaic.version = 11 : i64} {
  func.func @kernel(%arg0: i32, %arg1: memref<1x8x256xf32, #tpu.memory_space<vmem>>, %arg2: memref<2x4x256xf32, #tpu.memory_space<vmem>>, %arg3: memref<4x36xf32, #tpu.memory_space<vmem>>, %arg4: memref<4x36xf32, #tpu.memory_space<vmem>>, %arg5: memref<4x36xf32, #tpu.memory_space<vmem>>, %arg6: memref<4x36xf32, #tpu.memory_space<vmem>>, %arg7: memref<1x8x256xf32, #tpu.memory_space<vmem>>, %arg8: memref<36x256xf32, #tpu.memory_space<vmem>>, %arg9: memref<4x288xf32, #tpu.memory_space<vmem>>, %arg10: memref<4x258xf32, #tpu.memory_space<vmem>>) attributes {dimension_semantics = [#tpu.dimension_semantics<parallel>], iteration_bounds = array<i64: 2>, scalar_prefetch = 0 : i64, scratch_operands = 3 : i64, tpu.core_type = #tpu.core_type<tc>, window_params = [{transform_indices = @transform_0, window_bounds = array<i64: 1, 8, 256>}, {pipeline_mode = #tpu.pipeline_mode<synchronous>, transform_indices = @transform_1, window_bounds = array<i64: 2, 4, 256>}, {pipeline_mode = #tpu.pipeline_mode<synchronous>, transform_indices = @transform_2, window_bounds = array<i64: 4, 36>}, {pipeline_mode = #tpu.pipeline_mode<synchronous>, transform_indices = @transform_3, window_bounds = array<i64: 4, 36>}, {pipeline_mode = #tpu.pipeline_mode<synchronous>, transform_indices = @transform_4, window_bounds = array<i64: 4, 36>}, {pipeline_mode = #tpu.pipeline_mode<synchronous>, transform_indices = @transform_5, window_bounds = array<i64: 4, 36>}, {transform_indices = @transform_6, window_bounds = array<i64: 1, 8, 256>}]} {
    %c0 = arith.constant 0 : index
    %c0_0 = arith.constant 0 : index
    %c0_1 = arith.constant 0 : index
    %0 = vector.load %arg2[%c0, %c0_0, %c0_1] : memref<2x4x256xf32, #tpu.memory_space<vmem>>, vector<1x4x256xf32>
    %1 = vector.shape_cast %0 : vector<1x4x256xf32> to vector<4x256xf32>
    %cst = arith.constant 0.000000e+00 : f32
    %2 = vector.broadcast %cst : f32 to vector<4x256xf32>
    %3 = arith.cmpf one, %1, %2 : vector<4x256xf32>
    %c1 = arith.constant 1 : index
    %c0_2 = arith.constant 0 : index
    %c0_3 = arith.constant 0 : index
    %4 = vector.load %arg2[%c1, %c0_2, %c0_3] : memref<2x4x256xf32, #tpu.memory_space<vmem>>, vector<1x4x256xf32>
    %5 = vector.shape_cast %4 : vector<1x4x256xf32> to vector<4x256xf32>
    %cst_4 = arith.constant 0.000000e+00 : f32
    %6 = vector.broadcast %cst_4 : f32 to vector<4x256xf32>
    %7 = arith.cmpf one, %5, %6 : vector<4x256xf32>
    %c0_5 = arith.constant 0 : index
    %c0_6 = arith.constant 0 : index
    %c0_7 = arith.constant 0 : index
    %8 = vector.load %arg1[%c0_5, %c0_6, %c0_7] : memref<1x8x256xf32, #tpu.memory_space<vmem>>, vector<1x8x256xf32>
    %9 = vector.shape_cast %8 : vector<1x8x256xf32> to vector<8x256xf32>
    %10 = vector.extract_strided_slice %9 {offsets = [0, 0], sizes = [4, 256], strides = [1, 1]} : vector<8x256xf32> to vector<4x256xf32>
    %11 = vector.extract_strided_slice %9 {offsets = [4, 0], sizes = [4, 256], strides = [1, 1]} : vector<8x256xf32> to vector<4x256xf32>
    %c0_8 = arith.constant 0 : index
    %c16 = arith.constant 16 : index
    %12 = vector.load %arg9[%c0_8, %c16] : memref<4x288xf32, #tpu.memory_space<vmem>>, vector<4x256xf32>
    tpu.vector_store %arg9[%c0_8, %c16], %11 {strides = array<i32>} : memref<4x288xf32, #tpu.memory_space<vmem>>, vector<4x256xf32>,
    %13 = vector.extract_strided_slice %11 {offsets = [0, 16], sizes = [4, 16], strides = [1, 1]} : vector<4x256xf32> to vector<4x16xf32>
    %c0_9 = arith.constant 0 : index
    %c0_10 = arith.constant 0 : index
    %14 = vector.load %arg9[%c0_9, %c0_10] : memref<4x288xf32, #tpu.memory_space<vmem>>, vector<4x16xf32>
    tpu.vector_store %arg9[%c0_9, %c0_10], %13 {strides = array<i32>} : memref<4x288xf32, #tpu.memory_space<vmem>>, vector<4x16xf32>,
    %15 = vector.extract_strided_slice %11 {offsets = [0, 224], sizes = [4, 16], strides = [1, 1]} : vector<4x256xf32> to vector<4x16xf32>
    %c0_11 = arith.constant 0 : index
    %c272 = arith.constant 272 : index
    %16 = vector.load %arg9[%c0_11, %c272] : memref<4x288xf32, #tpu.memory_space<vmem>>, vector<4x16xf32>
    tpu.vector_store %arg9[%c0_11, %c272], %15 {strides = array<i32>} : memref<4x288xf32, #tpu.memory_space<vmem>>, vector<4x16xf32>,
    %c0_12 = arith.constant 0 : index
    %c0_13 = arith.constant 0 : index
    %17 = vector.load %arg9[%c0_12, %c0_13] : memref<4x288xf32, #tpu.memory_space<vmem>>, vector<4x256xf32>
    %c0_14 = arith.constant 0 : index
    %c1_15 = arith.constant 1 : index
    %18 = vector.load %arg10[%c0_14, %c1_15] : memref<4x258xf32, #tpu.memory_space<vmem>>, vector<4x256xf32>
    tpu.vector_store %arg10[%c0_14, %c1_15], %17 {strides = array<i32>} : memref<4x258xf32, #tpu.memory_space<vmem>>, vector<4x256xf32>,
    %19 = vector.extract_strided_slice %17 {offsets = [0, 0], sizes = [4, 1], strides = [1, 1]} : vector<4x256xf32> to vector<4x1xf32>
    %c0_16 = arith.constant 0 : index
    %c0_17 = arith.constant 0 : index
    %20 = vector.load %arg10[%c0_16, %c0_17] : memref<4x258xf32, #tpu.memory_space<vmem>>, vector<4x1xf32>
    tpu.vector_store %arg10[%c0_16, %c0_17], %19 {strides = array<i32>} : memref<4x258xf32, #tpu.memory_space<vmem>>, vector<4x1xf32>,
    %21 = vector.extract_strided_slice %17 {offsets = [0, 255], sizes = [4, 1], strides = [1, 1]} : vector<4x256xf32> to vector<4x1xf32>
    %c0_18 = arith.constant 0 : index
    %c257 = arith.constant 257 : index
    %22 = vector.load %arg10[%c0_18, %c257] : memref<4x258xf32, #tpu.memory_space<vmem>>, vector<4x1xf32>
    tpu.vector_store %arg10[%c0_18, %c257], %21 {strides = array<i32>} : memref<4x258xf32, #tpu.memory_space<vmem>>, vector<4x1xf32>,
    %c0_19 = arith.constant 0 : index
    %c0_20 = arith.constant 0 : index
    %23 = vector.load %arg10[%c0_19, %c0_20] : memref<4x258xf32, #tpu.memory_space<vmem>>, vector<4x256xf32>
    %c0_21 = arith.constant 0 : index
    %c2 = arith.constant 2 : index
    %24 = vector.load %arg10[%c0_21, %c2] : memref<4x258xf32, #tpu.memory_space<vmem>>, vector<4x256xf32>
    %25 = arith.select %3, %24, %23 : vector<4x256xi1>, vector<4x256xf32>
    %c0_22 = arith.constant 0 : index
    %c0_23 = arith.constant 0 : index
    %26 = vector.load %arg8[%c0_22, %c0_23] : memref<36x256xf32, #tpu.memory_space<vmem>>, vector<4x256xf32>
    tpu.vector_store %arg8[%c0_22, %c0_23], %25 {strides = array<i32>} : memref<36x256xf32, #tpu.memory_space<vmem>>, vector<4x256xf32>,
    %c4 = arith.constant 4 : index
    %c0_24 = arith.constant 0 : index
    %27 = vector.load %arg8[%c4, %c0_24] : memref<36x256xf32, #tpu.memory_space<vmem>>, vector<4x256xf32>
    tpu.vector_store %arg8[%c4, %c0_24], %17 {strides = array<i32>} : memref<36x256xf32, #tpu.memory_space<vmem>>, vector<4x256xf32>,
    %c0_25 = arith.constant 0 : index
    %c2_26 = arith.constant 2 : index
    %28 = vector.load %arg10[%c0_25, %c2_26] : memref<4x258xf32, #tpu.memory_space<vmem>>, vector<4x256xf32>
    %c0_27 = arith.constant 0 : index
    %c0_28 = arith.constant 0 : index
    %29 = vector.load %arg10[%c0_27, %c0_28] : memref<4x258xf32, #tpu.memory_space<vmem>>, vector<4x256xf32>
    %30 = arith.select %7, %29, %28 : vector<4x256xi1>, vector<4x256xf32>
    %c8 = arith.constant 8 : index
    %c0_29 = arith.constant 0 : index
    %31 = vector.load %arg8[%c8, %c0_29] : memref<36x256xf32, #tpu.memory_space<vmem>>, vector<4x256xf32>
    tpu.vector_store %arg8[%c8, %c0_29], %30 {strides = array<i32>} : memref<36x256xf32, #tpu.memory_space<vmem>>, vector<4x256xf32>,
    %c0_30 = arith.constant 0 : index
    %c16_31 = arith.constant 16 : index
    %32 = vector.load %arg9[%c0_30, %c16_31] : memref<4x288xf32, #tpu.memory_space<vmem>>, vector<4x256xf32>
    %c0_32 = arith.constant 0 : index
    %c1_33 = arith.constant 1 : index
    %33 = vector.load %arg10[%c0_32, %c1_33] : memref<4x258xf32, #tpu.memory_space<vmem>>, vector<4x256xf32>
    tpu.vector_store %arg10[%c0_32, %c1_33], %32 {strides = array<i32>} : memref<4x258xf32, #tpu.memory_space<vmem>>, vector<4x256xf32>,
    %34 = vector.extract_strided_slice %32 {offsets = [0, 0], sizes = [4, 1], strides = [1, 1]} : vector<4x256xf32> to vector<4x1xf32>
    %c0_34 = arith.constant 0 : index
    %c0_35 = arith.constant 0 : index
    %35 = vector.load %arg10[%c0_34, %c0_35] : memref<4x258xf32, #tpu.memory_space<vmem>>, vector<4x1xf32>
    tpu.vector_store %arg10[%c0_34, %c0_35], %34 {strides = array<i32>} : memref<4x258xf32, #tpu.memory_space<vmem>>, vector<4x1xf32>,
    %36 = vector.extract_strided_slice %32 {offsets = [0, 255], sizes = [4, 1], strides = [1, 1]} : vector<4x256xf32> to vector<4x1xf32>
    %c0_36 = arith.constant 0 : index
    %c257_37 = arith.constant 257 : index
    %37 = vector.load %arg10[%c0_36, %c257_37] : memref<4x258xf32, #tpu.memory_space<vmem>>, vector<4x1xf32>
    tpu.vector_store %arg10[%c0_36, %c257_37], %36 {strides = array<i32>} : memref<4x258xf32, #tpu.memory_space<vmem>>, vector<4x1xf32>,
    %c0_38 = arith.constant 0 : index
    %c0_39 = arith.constant 0 : index
    %38 = vector.load %arg10[%c0_38, %c0_39] : memref<4x258xf32, #tpu.memory_space<vmem>>, vector<4x256xf32>
    %c0_40 = arith.constant 0 : index
    %c2_41 = arith.constant 2 : index
    %39 = vector.load %arg10[%c0_40, %c2_41] : memref<4x258xf32, #tpu.memory_space<vmem>>, vector<4x256xf32>
    %40 = arith.select %3, %39, %38 : vector<4x256xi1>, vector<4x256xf32>
    %c12 = arith.constant 12 : index
    %c0_42 = arith.constant 0 : index
    %41 = vector.load %arg8[%c12, %c0_42] : memref<36x256xf32, #tpu.memory_space<vmem>>, vector<4x256xf32>
    tpu.vector_store %arg8[%c12, %c0_42], %40 {strides = array<i32>} : memref<36x256xf32, #tpu.memory_space<vmem>>, vector<4x256xf32>,
    %c16_43 = arith.constant 16 : index
    %c0_44 = arith.constant 0 : index
    %42 = vector.load %arg8[%c16_43, %c0_44] : memref<36x256xf32, #tpu.memory_space<vmem>>, vector<4x256xf32>
    tpu.vector_store %arg8[%c16_43, %c0_44], %32 {strides = array<i32>} : memref<36x256xf32, #tpu.memory_space<vmem>>, vector<4x256xf32>,
    %c0_45 = arith.constant 0 : index
    %c2_46 = arith.constant 2 : index
    %43 = vector.load %arg10[%c0_45, %c2_46] : memref<4x258xf32, #tpu.memory_space<vmem>>, vector<4x256xf32>
    %c0_47 = arith.constant 0 : index
    %c0_48 = arith.constant 0 : index
    %44 = vector.load %arg10[%c0_47, %c0_48] : memref<4x258xf32, #tpu.memory_space<vmem>>, vector<4x256xf32>
    %45 = arith.select %7, %44, %43 : vector<4x256xi1>, vector<4x256xf32>
    %c20 = arith.constant 20 : index
    %c0_49 = arith.constant 0 : index
    %46 = vector.load %arg8[%c20, %c0_49] : memref<36x256xf32, #tpu.memory_space<vmem>>, vector<4x256xf32>
    tpu.vector_store %arg8[%c20, %c0_49], %45 {strides = array<i32>} : memref<36x256xf32, #tpu.memory_space<vmem>>, vector<4x256xf32>,
    %c0_50 = arith.constant 0 : index
    %c32 = arith.constant 32 : index
    %47 = vector.load %arg9[%c0_50, %c32] : memref<4x288xf32, #tpu.memory_space<vmem>>, vector<4x256xf32>
    %c0_51 = arith.constant 0 : index
    %c1_52 = arith.constant 1 : index
    %48 = vector.load %arg10[%c0_51, %c1_52] : memref<4x258xf32, #tpu.memory_space<vmem>>, vector<4x256xf32>
    tpu.vector_store %arg10[%c0_51, %c1_52], %47 {strides = array<i32>} : memref<4x258xf32, #tpu.memory_space<vmem>>, vector<4x256xf32>,
    %49 = vector.extract_strided_slice %47 {offsets = [0, 0], sizes = [4, 1], strides = [1, 1]} : vector<4x256xf32> to vector<4x1xf32>
    %c0_53 = arith.constant 0 : index
    %c0_54 = arith.constant 0 : index
    %50 = vector.load %arg10[%c0_53, %c0_54] : memref<4x258xf32, #tpu.memory_space<vmem>>, vector<4x1xf32>
    tpu.vector_store %arg10[%c0_53, %c0_54], %49 {strides = array<i32>} : memref<4x258xf32, #tpu.memory_space<vmem>>, vector<4x1xf32>,
    %51 = vector.extract_strided_slice %47 {offsets = [0, 255], sizes = [4, 1], strides = [1, 1]} : vector<4x256xf32> to vector<4x1xf32>
    %c0_55 = arith.constant 0 : index
    %c257_56 = arith.constant 257 : index
    %52 = vector.load %arg10[%c0_55, %c257_56] : memref<4x258xf32, #tpu.memory_space<vmem>>, vector<4x1xf32>
    tpu.vector_store %arg10[%c0_55, %c257_56], %51 {strides = array<i32>} : memref<4x258xf32, #tpu.memory_space<vmem>>, vector<4x1xf32>,
    %c0_57 = arith.constant 0 : index
    %c0_58 = arith.constant 0 : index
    %53 = vector.load %arg10[%c0_57, %c0_58] : memref<4x258xf32, #tpu.memory_space<vmem>>, vector<4x256xf32>
    %c0_59 = arith.constant 0 : index
    %c2_60 = arith.constant 2 : index
    %54 = vector.load %arg10[%c0_59, %c2_60] : memref<4x258xf32, #tpu.memory_space<vmem>>, vector<4x256xf32>
    %55 = arith.select %3, %54, %53 : vector<4x256xi1>, vector<4x256xf32>
    %c24 = arith.constant 24 : index
    %c0_61 = arith.constant 0 : index
    %56 = vector.load %arg8[%c24, %c0_61] : memref<36x256xf32, #tpu.memory_space<vmem>>, vector<4x256xf32>
    tpu.vector_store %arg8[%c24, %c0_61], %55 {strides = array<i32>} : memref<36x256xf32, #tpu.memory_space<vmem>>, vector<4x256xf32>,
    %c28 = arith.constant 28 : index
    %c0_62 = arith.constant 0 : index
    %57 = vector.load %arg8[%c28, %c0_62] : memref<36x256xf32, #tpu.memory_space<vmem>>, vector<4x256xf32>
    tpu.vector_store %arg8[%c28, %c0_62], %47 {strides = array<i32>} : memref<36x256xf32, #tpu.memory_space<vmem>>, vector<4x256xf32>,
    %c0_63 = arith.constant 0 : index
    %c2_64 = arith.constant 2 : index
    %58 = vector.load %arg10[%c0_63, %c2_64] : memref<4x258xf32, #tpu.memory_space<vmem>>, vector<4x256xf32>
    %c0_65 = arith.constant 0 : index
    %c0_66 = arith.constant 0 : index
    %59 = vector.load %arg10[%c0_65, %c0_66] : memref<4x258xf32, #tpu.memory_space<vmem>>, vector<4x256xf32>
    %60 = arith.select %7, %59, %58 : vector<4x256xi1>, vector<4x256xf32>
    %c32_67 = arith.constant 32 : index
    %c0_68 = arith.constant 0 : index
    %61 = vector.load %arg8[%c32_67, %c0_68] : memref<36x256xf32, #tpu.memory_space<vmem>>, vector<4x256xf32>
    tpu.vector_store %arg8[%c32_67, %c0_68], %60 {strides = array<i32>} : memref<36x256xf32, #tpu.memory_space<vmem>>, vector<4x256xf32>,
    %c0_69 = arith.constant 0 : index
    %c0_70 = arith.constant 0 : index
    %62 = vector.load %arg3[%c0_69, %c0_70] : memref<4x36xf32, #tpu.memory_space<vmem>>, vector<4x36xf32>
    %c0_71 = arith.constant 0 : index
    %c0_72 = arith.constant 0 : index
    %63 = vector.load %arg8[%c0_71, %c0_72] : memref<36x256xf32, #tpu.memory_space<vmem>>, vector<36x256xf32>
    %cst_73 = arith.constant dense<0.000000e+00> : vector<4x256xf32>
    %64 = tpu.matmul %62, %63, %cst_73 {dimension_numbers = #tpu.dot_dimension_numbers<[1], [0], [0], [1], [0, 0, 1, 1], [], []>} : vector<4x36xf32>, vector<36x256xf32>, vector<4x256xf32> -> vector<4x256xf32>
    %cst_74 = arith.constant dense<0.000000e+00> : vector<4xf32>
    %65 = vector.multi_reduction <add>, %64, %cst_74 [1] : vector<4x256xf32> to vector<4xf32>
    %66 = vector.shape_cast %65 : vector<4xf32> to vector<4x1xf32>
    %67 = arith.mulf %64, %64 : vector<4x256xf32>
    %cst_75 = arith.constant dense<0.000000e+00> : vector<4xf32>
    %68 = vector.multi_reduction <add>, %67, %cst_75 [1] : vector<4x256xf32> to vector<4xf32>
    %69 = vector.shape_cast %68 : vector<4xf32> to vector<4x1xf32>
    %cst_76 = arith.constant 3.906250e-03 : f32
    %70 = vector.broadcast %cst_76 : f32 to vector<4x1xf32>
    %71 = arith.mulf %66, %70 : vector<4x1xf32>
    %cst_77 = arith.constant 3.906250e-03 : f32
    %72 = vector.broadcast %cst_77 : f32 to vector<4x1xf32>
    %73 = arith.mulf %69, %72 : vector<4x1xf32>
    %74 = arith.mulf %71, %71 : vector<4x1xf32>
    %75 = arith.subf %73, %74 : vector<4x1xf32>
    %cst_78 = arith.constant 0.000000e+00 : f32
    %76 = vector.broadcast %cst_78 : f32 to vector<4x1xf32>
    %77 = arith.maximumf %75, %76 : vector<4x1xf32>
    %78 = vector.broadcast %71 : vector<4x1xf32> to vector<4x256xf32>
    %79 = arith.subf %64, %78 : vector<4x256xf32>
    %cst_79 = arith.constant 9.99999974E-6 : f32
    %80 = vector.broadcast %cst_79 : f32 to vector<4x1xf32>
    %81 = arith.addf %77, %80 : vector<4x1xf32>
    %82 = math.rsqrt %81 : vector<4x1xf32>
    %83 = vector.broadcast %82 : vector<4x1xf32> to vector<4x256xf32>
    %84 = arith.mulf %79, %83 : vector<4x256xf32>
    %cst_80 = arith.constant 0.000000e+00 : f32
    %85 = vector.broadcast %cst_80 : f32 to vector<4x256xf32>
    %86 = arith.maximumf %84, %85 : vector<4x256xf32>
    %c0_81 = arith.constant 0 : index
    %c16_82 = arith.constant 16 : index
    %87 = vector.load %arg9[%c0_81, %c16_82] : memref<4x288xf32, #tpu.memory_space<vmem>>, vector<4x256xf32>
    tpu.vector_store %arg9[%c0_81, %c16_82], %86 {strides = array<i32>} : memref<4x288xf32, #tpu.memory_space<vmem>>, vector<4x256xf32>,
    %88 = vector.extract_strided_slice %86 {offsets = [0, 16], sizes = [4, 16], strides = [1, 1]} : vector<4x256xf32> to vector<4x16xf32>
    %c0_83 = arith.constant 0 : index
    %c0_84 = arith.constant 0 : index
    %89 = vector.load %arg9[%c0_83, %c0_84] : memref<4x288xf32, #tpu.memory_space<vmem>>, vector<4x16xf32>
    tpu.vector_store %arg9[%c0_83, %c0_84], %88 {strides = array<i32>} : memref<4x288xf32, #tpu.memory_space<vmem>>, vector<4x16xf32>,
    %90 = vector.extract_strided_slice %86 {offsets = [0, 224], sizes = [4, 16], strides = [1, 1]} : vector<4x256xf32> to vector<4x16xf32>
    %c0_85 = arith.constant 0 : index
    %c272_86 = arith.constant 272 : index
    %91 = vector.load %arg9[%c0_85, %c272_86] : memref<4x288xf32, #tpu.memory_space<vmem>>, vector<4x16xf32>
    tpu.vector_store %arg9[%c0_85, %c272_86], %90 {strides = array<i32>} : memref<4x288xf32, #tpu.memory_space<vmem>>, vector<4x16xf32>,
    %c0_87 = arith.constant 0 : index
    %c0_88 = arith.constant 0 : index
    %92 = vector.load %arg9[%c0_87, %c0_88] : memref<4x288xf32, #tpu.memory_space<vmem>>, vector<4x256xf32>
    %c0_89 = arith.constant 0 : index
    %c1_90 = arith.constant 1 : index
    %93 = vector.load %arg10[%c0_89, %c1_90] : memref<4x258xf32, #tpu.memory_space<vmem>>, vector<4x256xf32>
    tpu.vector_store %arg10[%c0_89, %c1_90], %92 {strides = array<i32>} : memref<4x258xf32, #tpu.memory_space<vmem>>, vector<4x256xf32>,
    %94 = vector.extract_strided_slice %92 {offsets = [0, 0], sizes = [4, 1], strides = [1, 1]} : vector<4x256xf32> to vector<4x1xf32>
    %c0_91 = arith.constant 0 : index
    %c0_92 = arith.constant 0 : index
    %95 = vector.load %arg10[%c0_91, %c0_92] : memref<4x258xf32, #tpu.memory_space<vmem>>, vector<4x1xf32>
    tpu.vector_store %arg10[%c0_91, %c0_92], %94 {strides = array<i32>} : memref<4x258xf32, #tpu.memory_space<vmem>>, vector<4x1xf32>,
    %96 = vector.extract_strided_slice %92 {offsets = [0, 255], sizes = [4, 1], strides = [1, 1]} : vector<4x256xf32> to vector<4x1xf32>
    %c0_93 = arith.constant 0 : index
    %c257_94 = arith.constant 257 : index
    %97 = vector.load %arg10[%c0_93, %c257_94] : memref<4x258xf32, #tpu.memory_space<vmem>>, vector<4x1xf32>
    tpu.vector_store %arg10[%c0_93, %c257_94], %96 {strides = array<i32>} : memref<4x258xf32, #tpu.memory_space<vmem>>, vector<4x1xf32>,
    %c0_95 = arith.constant 0 : index
    %c0_96 = arith.constant 0 : index
    %98 = vector.load %arg10[%c0_95, %c0_96] : memref<4x258xf32, #tpu.memory_space<vmem>>, vector<4x256xf32>
    %c0_97 = arith.constant 0 : index
    %c2_98 = arith.constant 2 : index
    %99 = vector.load %arg10[%c0_97, %c2_98] : memref<4x258xf32, #tpu.memory_space<vmem>>, vector<4x256xf32>
    %100 = arith.select %3, %99, %98 : vector<4x256xi1>, vector<4x256xf32>
    %c0_99 = arith.constant 0 : index
    %c0_100 = arith.constant 0 : index
    %101 = vector.load %arg8[%c0_99, %c0_100] : memref<36x256xf32, #tpu.memory_space<vmem>>, vector<4x256xf32>
    tpu.vector_store %arg8[%c0_99, %c0_100], %100 {strides = array<i32>} : memref<36x256xf32, #tpu.memory_space<vmem>>, vector<4x256xf32>,
    %c4_101 = arith.constant 4 : index
    %c0_102 = arith.constant 0 : index
    %102 = vector.load %arg8[%c4_101, %c0_102] : memref<36x256xf32, #tpu.memory_space<vmem>>, vector<4x256xf32>
    tpu.vector_store %arg8[%c4_101, %c0_102], %92 {strides = array<i32>} : memref<36x256xf32, #tpu.memory_space<vmem>>, vector<4x256xf32>,
    %c0_103 = arith.constant 0 : index
    %c2_104 = arith.constant 2 : index
    %103 = vector.load %arg10[%c0_103, %c2_104] : memref<4x258xf32, #tpu.memory_space<vmem>>, vector<4x256xf32>
    %c0_105 = arith.constant 0 : index
    %c0_106 = arith.constant 0 : index
    %104 = vector.load %arg10[%c0_105, %c0_106] : memref<4x258xf32, #tpu.memory_space<vmem>>, vector<4x256xf32>
    %105 = arith.select %7, %104, %103 : vector<4x256xi1>, vector<4x256xf32>
    %c8_107 = arith.constant 8 : index
    %c0_108 = arith.constant 0 : index
    %106 = vector.load %arg8[%c8_107, %c0_108] : memref<36x256xf32, #tpu.memory_space<vmem>>, vector<4x256xf32>
    tpu.vector_store %arg8[%c8_107, %c0_108], %105 {strides = array<i32>} : memref<36x256xf32, #tpu.memory_space<vmem>>, vector<4x256xf32>,
    %c0_109 = arith.constant 0 : index
    %c16_110 = arith.constant 16 : index
    %107 = vector.load %arg9[%c0_109, %c16_110] : memref<4x288xf32, #tpu.memory_space<vmem>>, vector<4x256xf32>
    %c0_111 = arith.constant 0 : index
    %c1_112 = arith.constant 1 : index
    %108 = vector.load %arg10[%c0_111, %c1_112] : memref<4x258xf32, #tpu.memory_space<vmem>>, vector<4x256xf32>
    tpu.vector_store %arg10[%c0_111, %c1_112], %107 {strides = array<i32>} : memref<4x258xf32, #tpu.memory_space<vmem>>, vector<4x256xf32>,
    %109 = vector.extract_strided_slice %107 {offsets = [0, 0], sizes = [4, 1], strides = [1, 1]} : vector<4x256xf32> to vector<4x1xf32>
    %c0_113 = arith.constant 0 : index
    %c0_114 = arith.constant 0 : index
    %110 = vector.load %arg10[%c0_113, %c0_114] : memref<4x258xf32, #tpu.memory_space<vmem>>, vector<4x1xf32>
    tpu.vector_store %arg10[%c0_113, %c0_114], %109 {strides = array<i32>} : memref<4x258xf32, #tpu.memory_space<vmem>>, vector<4x1xf32>,
    %111 = vector.extract_strided_slice %107 {offsets = [0, 255], sizes = [4, 1], strides = [1, 1]} : vector<4x256xf32> to vector<4x1xf32>
    %c0_115 = arith.constant 0 : index
    %c257_116 = arith.constant 257 : index
    %112 = vector.load %arg10[%c0_115, %c257_116] : memref<4x258xf32, #tpu.memory_space<vmem>>, vector<4x1xf32>
    tpu.vector_store %arg10[%c0_115, %c257_116], %111 {strides = array<i32>} : memref<4x258xf32, #tpu.memory_space<vmem>>, vector<4x1xf32>,
    %c0_117 = arith.constant 0 : index
    %c0_118 = arith.constant 0 : index
    %113 = vector.load %arg10[%c0_117, %c0_118] : memref<4x258xf32, #tpu.memory_space<vmem>>, vector<4x256xf32>
    %c0_119 = arith.constant 0 : index
    %c2_120 = arith.constant 2 : index
    %114 = vector.load %arg10[%c0_119, %c2_120] : memref<4x258xf32, #tpu.memory_space<vmem>>, vector<4x256xf32>
    %115 = arith.select %3, %114, %113 : vector<4x256xi1>, vector<4x256xf32>
    %c12_121 = arith.constant 12 : index
    %c0_122 = arith.constant 0 : index
    %116 = vector.load %arg8[%c12_121, %c0_122] : memref<36x256xf32, #tpu.memory_space<vmem>>, vector<4x256xf32>
    tpu.vector_store %arg8[%c12_121, %c0_122], %115 {strides = array<i32>} : memref<36x256xf32, #tpu.memory_space<vmem>>, vector<4x256xf32>,
    %c16_123 = arith.constant 16 : index
    %c0_124 = arith.constant 0 : index
    %117 = vector.load %arg8[%c16_123, %c0_124] : memref<36x256xf32, #tpu.memory_space<vmem>>, vector<4x256xf32>
    tpu.vector_store %arg8[%c16_123, %c0_124], %107 {strides = array<i32>} : memref<36x256xf32, #tpu.memory_space<vmem>>, vector<4x256xf32>,
    %c0_125 = arith.constant 0 : index
    %c2_126 = arith.constant 2 : index
    %118 = vector.load %arg10[%c0_125, %c2_126] : memref<4x258xf32, #tpu.memory_space<vmem>>, vector<4x256xf32>
    %c0_127 = arith.constant 0 : index
    %c0_128 = arith.constant 0 : index
    %119 = vector.load %arg10[%c0_127, %c0_128] : memref<4x258xf32, #tpu.memory_space<vmem>>, vector<4x256xf32>
    %120 = arith.select %7, %119, %118 : vector<4x256xi1>, vector<4x256xf32>
    %c20_129 = arith.constant 20 : index
    %c0_130 = arith.constant 0 : index
    %121 = vector.load %arg8[%c20_129, %c0_130] : memref<36x256xf32, #tpu.memory_space<vmem>>, vector<4x256xf32>
    tpu.vector_store %arg8[%c20_129, %c0_130], %120 {strides = array<i32>} : memref<36x256xf32, #tpu.memory_space<vmem>>, vector<4x256xf32>,
    %c0_131 = arith.constant 0 : index
    %c32_132 = arith.constant 32 : index
    %122 = vector.load %arg9[%c0_131, %c32_132] : memref<4x288xf32, #tpu.memory_space<vmem>>, vector<4x256xf32>
    %c0_133 = arith.constant 0 : index
    %c1_134 = arith.constant 1 : index
    %123 = vector.load %arg10[%c0_133, %c1_134] : memref<4x258xf32, #tpu.memory_space<vmem>>, vector<4x256xf32>
    tpu.vector_store %arg10[%c0_133, %c1_134], %122 {strides = array<i32>} : memref<4x258xf32, #tpu.memory_space<vmem>>, vector<4x256xf32>,
    %124 = vector.extract_strided_slice %122 {offsets = [0, 0], sizes = [4, 1], strides = [1, 1]} : vector<4x256xf32> to vector<4x1xf32>
    %c0_135 = arith.constant 0 : index
    %c0_136 = arith.constant 0 : index
    %125 = vector.load %arg10[%c0_135, %c0_136] : memref<4x258xf32, #tpu.memory_space<vmem>>, vector<4x1xf32>
    tpu.vector_store %arg10[%c0_135, %c0_136], %124 {strides = array<i32>} : memref<4x258xf32, #tpu.memory_space<vmem>>, vector<4x1xf32>,
    %126 = vector.extract_strided_slice %122 {offsets = [0, 255], sizes = [4, 1], strides = [1, 1]} : vector<4x256xf32> to vector<4x1xf32>
    %c0_137 = arith.constant 0 : index
    %c257_138 = arith.constant 257 : index
    %127 = vector.load %arg10[%c0_137, %c257_138] : memref<4x258xf32, #tpu.memory_space<vmem>>, vector<4x1xf32>
    tpu.vector_store %arg10[%c0_137, %c257_138], %126 {strides = array<i32>} : memref<4x258xf32, #tpu.memory_space<vmem>>, vector<4x1xf32>,
    %c0_139 = arith.constant 0 : index
    %c0_140 = arith.constant 0 : index
    %128 = vector.load %arg10[%c0_139, %c0_140] : memref<4x258xf32, #tpu.memory_space<vmem>>, vector<4x256xf32>
    %c0_141 = arith.constant 0 : index
    %c2_142 = arith.constant 2 : index
    %129 = vector.load %arg10[%c0_141, %c2_142] : memref<4x258xf32, #tpu.memory_space<vmem>>, vector<4x256xf32>
    %130 = arith.select %3, %129, %128 : vector<4x256xi1>, vector<4x256xf32>
    %c24_143 = arith.constant 24 : index
    %c0_144 = arith.constant 0 : index
    %131 = vector.load %arg8[%c24_143, %c0_144] : memref<36x256xf32, #tpu.memory_space<vmem>>, vector<4x256xf32>
    tpu.vector_store %arg8[%c24_143, %c0_144], %130 {strides = array<i32>} : memref<36x256xf32, #tpu.memory_space<vmem>>, vector<4x256xf32>,
    %c28_145 = arith.constant 28 : index
    %c0_146 = arith.constant 0 : index
    %132 = vector.load %arg8[%c28_145, %c0_146] : memref<36x256xf32, #tpu.memory_space<vmem>>, vector<4x256xf32>
    tpu.vector_store %arg8[%c28_145, %c0_146], %122 {strides = array<i32>} : memref<36x256xf32, #tpu.memory_space<vmem>>, vector<4x256xf32>,
    %c0_147 = arith.constant 0 : index
    %c2_148 = arith.constant 2 : index
    %133 = vector.load %arg10[%c0_147, %c2_148] : memref<4x258xf32, #tpu.memory_space<vmem>>, vector<4x256xf32>
    %c0_149 = arith.constant 0 : index
    %c0_150 = arith.constant 0 : index
    %134 = vector.load %arg10[%c0_149, %c0_150] : memref<4x258xf32, #tpu.memory_space<vmem>>, vector<4x256xf32>
    %135 = arith.select %7, %134, %133 : vector<4x256xi1>, vector<4x256xf32>
    %c32_151 = arith.constant 32 : index
    %c0_152 = arith.constant 0 : index
    %136 = vector.load %arg8[%c32_151, %c0_152] : memref<36x256xf32, #tpu.memory_space<vmem>>, vector<4x256xf32>
    tpu.vector_store %arg8[%c32_151, %c0_152], %135 {strides = array<i32>} : memref<36x256xf32, #tpu.memory_space<vmem>>, vector<4x256xf32>,
    %c0_153 = arith.constant 0 : index
    %c0_154 = arith.constant 0 : index
    %137 = vector.load %arg4[%c0_153, %c0_154] : memref<4x36xf32, #tpu.memory_space<vmem>>, vector<4x36xf32>
    %c0_155 = arith.constant 0 : index
    %c0_156 = arith.constant 0 : index
    %138 = vector.load %arg8[%c0_155, %c0_156] : memref<36x256xf32, #tpu.memory_space<vmem>>, vector<36x256xf32>
    %cst_157 = arith.constant dense<0.000000e+00> : vector<4x256xf32>
    %139 = tpu.matmul %137, %138, %cst_157 {dimension_numbers = #tpu.dot_dimension_numbers<[1], [0], [0], [1], [0, 0, 1, 1], [], []>} : vector<4x36xf32>, vector<36x256xf32>, vector<4x256xf32> -> vector<4x256xf32>
    %cst_158 = arith.constant dense<0.000000e+00> : vector<4xf32>
    %140 = vector.multi_reduction <add>, %139, %cst_158 [1] : vector<4x256xf32> to vector<4xf32>
    %141 = vector.shape_cast %140 : vector<4xf32> to vector<4x1xf32>
    %142 = arith.mulf %139, %139 : vector<4x256xf32>
    %cst_159 = arith.constant dense<0.000000e+00> : vector<4xf32>
    %143 = vector.multi_reduction <add>, %142, %cst_159 [1] : vector<4x256xf32> to vector<4xf32>
    %144 = vector.shape_cast %143 : vector<4xf32> to vector<4x1xf32>
    %cst_160 = arith.constant 3.906250e-03 : f32
    %145 = vector.broadcast %cst_160 : f32 to vector<4x1xf32>
    %146 = arith.mulf %141, %145 : vector<4x1xf32>
    %cst_161 = arith.constant 3.906250e-03 : f32
    %147 = vector.broadcast %cst_161 : f32 to vector<4x1xf32>
    %148 = arith.mulf %144, %147 : vector<4x1xf32>
    %149 = arith.mulf %146, %146 : vector<4x1xf32>
    %150 = arith.subf %148, %149 : vector<4x1xf32>
    %cst_162 = arith.constant 0.000000e+00 : f32
    %151 = vector.broadcast %cst_162 : f32 to vector<4x1xf32>
    %152 = arith.maximumf %150, %151 : vector<4x1xf32>
    %153 = vector.broadcast %146 : vector<4x1xf32> to vector<4x256xf32>
    %154 = arith.subf %139, %153 : vector<4x256xf32>
    %cst_163 = arith.constant 9.99999974E-6 : f32
    %155 = vector.broadcast %cst_163 : f32 to vector<4x1xf32>
    %156 = arith.addf %152, %155 : vector<4x1xf32>
    %157 = math.rsqrt %156 : vector<4x1xf32>
    %158 = vector.broadcast %157 : vector<4x1xf32> to vector<4x256xf32>
    %159 = arith.mulf %154, %158 : vector<4x256xf32>
    %160 = arith.addf %10, %159 : vector<4x256xf32>
    %c0_164 = arith.constant 0 : index
    %c16_165 = arith.constant 16 : index
    %161 = vector.load %arg9[%c0_164, %c16_165] : memref<4x288xf32, #tpu.memory_space<vmem>>, vector<4x256xf32>
    tpu.vector_store %arg9[%c0_164, %c16_165], %160 {strides = array<i32>} : memref<4x288xf32, #tpu.memory_space<vmem>>, vector<4x256xf32>,
    %162 = vector.extract_strided_slice %160 {offsets = [0, 16], sizes = [4, 16], strides = [1, 1]} : vector<4x256xf32> to vector<4x16xf32>
    %c0_166 = arith.constant 0 : index
    %c0_167 = arith.constant 0 : index
    %163 = vector.load %arg9[%c0_166, %c0_167] : memref<4x288xf32, #tpu.memory_space<vmem>>, vector<4x16xf32>
    tpu.vector_store %arg9[%c0_166, %c0_167], %162 {strides = array<i32>} : memref<4x288xf32, #tpu.memory_space<vmem>>, vector<4x16xf32>,
    %164 = vector.extract_strided_slice %160 {offsets = [0, 224], sizes = [4, 16], strides = [1, 1]} : vector<4x256xf32> to vector<4x16xf32>
    %c0_168 = arith.constant 0 : index
    %c272_169 = arith.constant 272 : index
    %165 = vector.load %arg9[%c0_168, %c272_169] : memref<4x288xf32, #tpu.memory_space<vmem>>, vector<4x16xf32>
    tpu.vector_store %arg9[%c0_168, %c272_169], %164 {strides = array<i32>} : memref<4x288xf32, #tpu.memory_space<vmem>>, vector<4x16xf32>,
    %c0_170 = arith.constant 0 : index
    %c0_171 = arith.constant 0 : index
    %166 = vector.load %arg9[%c0_170, %c0_171] : memref<4x288xf32, #tpu.memory_space<vmem>>, vector<4x256xf32>
    %c0_172 = arith.constant 0 : index
    %c1_173 = arith.constant 1 : index
    %167 = vector.load %arg10[%c0_172, %c1_173] : memref<4x258xf32, #tpu.memory_space<vmem>>, vector<4x256xf32>
    tpu.vector_store %arg10[%c0_172, %c1_173], %166 {strides = array<i32>} : memref<4x258xf32, #tpu.memory_space<vmem>>, vector<4x256xf32>,
    %168 = vector.extract_strided_slice %166 {offsets = [0, 0], sizes = [4, 1], strides = [1, 1]} : vector<4x256xf32> to vector<4x1xf32>
    %c0_174 = arith.constant 0 : index
    %c0_175 = arith.constant 0 : index
    %169 = vector.load %arg10[%c0_174, %c0_175] : memref<4x258xf32, #tpu.memory_space<vmem>>, vector<4x1xf32>
    tpu.vector_store %arg10[%c0_174, %c0_175], %168 {strides = array<i32>} : memref<4x258xf32, #tpu.memory_space<vmem>>, vector<4x1xf32>,
    %170 = vector.extract_strided_slice %166 {offsets = [0, 255], sizes = [4, 1], strides = [1, 1]} : vector<4x256xf32> to vector<4x1xf32>
    %c0_176 = arith.constant 0 : index
    %c257_177 = arith.constant 257 : index
    %171 = vector.load %arg10[%c0_176, %c257_177] : memref<4x258xf32, #tpu.memory_space<vmem>>, vector<4x1xf32>
    tpu.vector_store %arg10[%c0_176, %c257_177], %170 {strides = array<i32>} : memref<4x258xf32, #tpu.memory_space<vmem>>, vector<4x1xf32>,
    %c0_178 = arith.constant 0 : index
    %c0_179 = arith.constant 0 : index
    %172 = vector.load %arg10[%c0_178, %c0_179] : memref<4x258xf32, #tpu.memory_space<vmem>>, vector<4x256xf32>
    %c0_180 = arith.constant 0 : index
    %c2_181 = arith.constant 2 : index
    %173 = vector.load %arg10[%c0_180, %c2_181] : memref<4x258xf32, #tpu.memory_space<vmem>>, vector<4x256xf32>
    %174 = arith.select %3, %173, %172 : vector<4x256xi1>, vector<4x256xf32>
    %c0_182 = arith.constant 0 : index
    %c0_183 = arith.constant 0 : index
    %175 = vector.load %arg8[%c0_182, %c0_183] : memref<36x256xf32, #tpu.memory_space<vmem>>, vector<4x256xf32>
    tpu.vector_store %arg8[%c0_182, %c0_183], %174 {strides = array<i32>} : memref<36x256xf32, #tpu.memory_space<vmem>>, vector<4x256xf32>,
    %c4_184 = arith.constant 4 : index
    %c0_185 = arith.constant 0 : index
    %176 = vector.load %arg8[%c4_184, %c0_185] : memref<36x256xf32, #tpu.memory_space<vmem>>, vector<4x256xf32>
    tpu.vector_store %arg8[%c4_184, %c0_185], %166 {strides = array<i32>} : memref<36x256xf32, #tpu.memory_space<vmem>>, vector<4x256xf32>,
    %c0_186 = arith.constant 0 : index
    %c2_187 = arith.constant 2 : index
    %177 = vector.load %arg10[%c0_186, %c2_187] : memref<4x258xf32, #tpu.memory_space<vmem>>, vector<4x256xf32>
    %c0_188 = arith.constant 0 : index
    %c0_189 = arith.constant 0 : index
    %178 = vector.load %arg10[%c0_188, %c0_189] : memref<4x258xf32, #tpu.memory_space<vmem>>, vector<4x256xf32>
    %179 = arith.select %7, %178, %177 : vector<4x256xi1>, vector<4x256xf32>
    %c8_190 = arith.constant 8 : index
    %c0_191 = arith.constant 0 : index
    %180 = vector.load %arg8[%c8_190, %c0_191] : memref<36x256xf32, #tpu.memory_space<vmem>>, vector<4x256xf32>
    tpu.vector_store %arg8[%c8_190, %c0_191], %179 {strides = array<i32>} : memref<36x256xf32, #tpu.memory_space<vmem>>, vector<4x256xf32>,
    %c0_192 = arith.constant 0 : index
    %c16_193 = arith.constant 16 : index
    %181 = vector.load %arg9[%c0_192, %c16_193] : memref<4x288xf32, #tpu.memory_space<vmem>>, vector<4x256xf32>
    %c0_194 = arith.constant 0 : index
    %c1_195 = arith.constant 1 : index
    %182 = vector.load %arg10[%c0_194, %c1_195] : memref<4x258xf32, #tpu.memory_space<vmem>>, vector<4x256xf32>
    tpu.vector_store %arg10[%c0_194, %c1_195], %181 {strides = array<i32>} : memref<4x258xf32, #tpu.memory_space<vmem>>, vector<4x256xf32>,
    %183 = vector.extract_strided_slice %181 {offsets = [0, 0], sizes = [4, 1], strides = [1, 1]} : vector<4x256xf32> to vector<4x1xf32>
    %c0_196 = arith.constant 0 : index
    %c0_197 = arith.constant 0 : index
    %184 = vector.load %arg10[%c0_196, %c0_197] : memref<4x258xf32, #tpu.memory_space<vmem>>, vector<4x1xf32>
    tpu.vector_store %arg10[%c0_196, %c0_197], %183 {strides = array<i32>} : memref<4x258xf32, #tpu.memory_space<vmem>>, vector<4x1xf32>,
    %185 = vector.extract_strided_slice %181 {offsets = [0, 255], sizes = [4, 1], strides = [1, 1]} : vector<4x256xf32> to vector<4x1xf32>
    %c0_198 = arith.constant 0 : index
    %c257_199 = arith.constant 257 : index
    %186 = vector.load %arg10[%c0_198, %c257_199] : memref<4x258xf32, #tpu.memory_space<vmem>>, vector<4x1xf32>
    tpu.vector_store %arg10[%c0_198, %c257_199], %185 {strides = array<i32>} : memref<4x258xf32, #tpu.memory_space<vmem>>, vector<4x1xf32>,
    %c0_200 = arith.constant 0 : index
    %c0_201 = arith.constant 0 : index
    %187 = vector.load %arg10[%c0_200, %c0_201] : memref<4x258xf32, #tpu.memory_space<vmem>>, vector<4x256xf32>
    %c0_202 = arith.constant 0 : index
    %c2_203 = arith.constant 2 : index
    %188 = vector.load %arg10[%c0_202, %c2_203] : memref<4x258xf32, #tpu.memory_space<vmem>>, vector<4x256xf32>
    %189 = arith.select %3, %188, %187 : vector<4x256xi1>, vector<4x256xf32>
    %c12_204 = arith.constant 12 : index
    %c0_205 = arith.constant 0 : index
    %190 = vector.load %arg8[%c12_204, %c0_205] : memref<36x256xf32, #tpu.memory_space<vmem>>, vector<4x256xf32>
    tpu.vector_store %arg8[%c12_204, %c0_205], %189 {strides = array<i32>} : memref<36x256xf32, #tpu.memory_space<vmem>>, vector<4x256xf32>,
    %c16_206 = arith.constant 16 : index
    %c0_207 = arith.constant 0 : index
    %191 = vector.load %arg8[%c16_206, %c0_207] : memref<36x256xf32, #tpu.memory_space<vmem>>, vector<4x256xf32>
    tpu.vector_store %arg8[%c16_206, %c0_207], %181 {strides = array<i32>} : memref<36x256xf32, #tpu.memory_space<vmem>>, vector<4x256xf32>,
    %c0_208 = arith.constant 0 : index
    %c2_209 = arith.constant 2 : index
    %192 = vector.load %arg10[%c0_208, %c2_209] : memref<4x258xf32, #tpu.memory_space<vmem>>, vector<4x256xf32>
    %c0_210 = arith.constant 0 : index
    %c0_211 = arith.constant 0 : index
    %193 = vector.load %arg10[%c0_210, %c0_211] : memref<4x258xf32, #tpu.memory_space<vmem>>, vector<4x256xf32>
    %194 = arith.select %7, %193, %192 : vector<4x256xi1>, vector<4x256xf32>
    %c20_212 = arith.constant 20 : index
    %c0_213 = arith.constant 0 : index
    %195 = vector.load %arg8[%c20_212, %c0_213] : memref<36x256xf32, #tpu.memory_space<vmem>>, vector<4x256xf32>
    tpu.vector_store %arg8[%c20_212, %c0_213], %194 {strides = array<i32>} : memref<36x256xf32, #tpu.memory_space<vmem>>, vector<4x256xf32>,
    %c0_214 = arith.constant 0 : index
    %c32_215 = arith.constant 32 : index
    %196 = vector.load %arg9[%c0_214, %c32_215] : memref<4x288xf32, #tpu.memory_space<vmem>>, vector<4x256xf32>
    %c0_216 = arith.constant 0 : index
    %c1_217 = arith.constant 1 : index
    %197 = vector.load %arg10[%c0_216, %c1_217] : memref<4x258xf32, #tpu.memory_space<vmem>>, vector<4x256xf32>
    tpu.vector_store %arg10[%c0_216, %c1_217], %196 {strides = array<i32>} : memref<4x258xf32, #tpu.memory_space<vmem>>, vector<4x256xf32>,
    %198 = vector.extract_strided_slice %196 {offsets = [0, 0], sizes = [4, 1], strides = [1, 1]} : vector<4x256xf32> to vector<4x1xf32>
    %c0_218 = arith.constant 0 : index
    %c0_219 = arith.constant 0 : index
    %199 = vector.load %arg10[%c0_218, %c0_219] : memref<4x258xf32, #tpu.memory_space<vmem>>, vector<4x1xf32>
    tpu.vector_store %arg10[%c0_218, %c0_219], %198 {strides = array<i32>} : memref<4x258xf32, #tpu.memory_space<vmem>>, vector<4x1xf32>,
    %200 = vector.extract_strided_slice %196 {offsets = [0, 255], sizes = [4, 1], strides = [1, 1]} : vector<4x256xf32> to vector<4x1xf32>
    %c0_220 = arith.constant 0 : index
    %c257_221 = arith.constant 257 : index
    %201 = vector.load %arg10[%c0_220, %c257_221] : memref<4x258xf32, #tpu.memory_space<vmem>>, vector<4x1xf32>
    tpu.vector_store %arg10[%c0_220, %c257_221], %200 {strides = array<i32>} : memref<4x258xf32, #tpu.memory_space<vmem>>, vector<4x1xf32>,
    %c0_222 = arith.constant 0 : index
    %c0_223 = arith.constant 0 : index
    %202 = vector.load %arg10[%c0_222, %c0_223] : memref<4x258xf32, #tpu.memory_space<vmem>>, vector<4x256xf32>
    %c0_224 = arith.constant 0 : index
    %c2_225 = arith.constant 2 : index
    %203 = vector.load %arg10[%c0_224, %c2_225] : memref<4x258xf32, #tpu.memory_space<vmem>>, vector<4x256xf32>
    %204 = arith.select %3, %203, %202 : vector<4x256xi1>, vector<4x256xf32>
    %c24_226 = arith.constant 24 : index
    %c0_227 = arith.constant 0 : index
    %205 = vector.load %arg8[%c24_226, %c0_227] : memref<36x256xf32, #tpu.memory_space<vmem>>, vector<4x256xf32>
    tpu.vector_store %arg8[%c24_226, %c0_227], %204 {strides = array<i32>} : memref<36x256xf32, #tpu.memory_space<vmem>>, vector<4x256xf32>,
    %c28_228 = arith.constant 28 : index
    %c0_229 = arith.constant 0 : index
    %206 = vector.load %arg8[%c28_228, %c0_229] : memref<36x256xf32, #tpu.memory_space<vmem>>, vector<4x256xf32>
    tpu.vector_store %arg8[%c28_228, %c0_229], %196 {strides = array<i32>} : memref<36x256xf32, #tpu.memory_space<vmem>>, vector<4x256xf32>,
    %c0_230 = arith.constant 0 : index
    %c2_231 = arith.constant 2 : index
    %207 = vector.load %arg10[%c0_230, %c2_231] : memref<4x258xf32, #tpu.memory_space<vmem>>, vector<4x256xf32>
    %c0_232 = arith.constant 0 : index
    %c0_233 = arith.constant 0 : index
    %208 = vector.load %arg10[%c0_232, %c0_233] : memref<4x258xf32, #tpu.memory_space<vmem>>, vector<4x256xf32>
    %209 = arith.select %7, %208, %207 : vector<4x256xi1>, vector<4x256xf32>
    %c32_234 = arith.constant 32 : index
    %c0_235 = arith.constant 0 : index
    %210 = vector.load %arg8[%c32_234, %c0_235] : memref<36x256xf32, #tpu.memory_space<vmem>>, vector<4x256xf32>
    tpu.vector_store %arg8[%c32_234, %c0_235], %209 {strides = array<i32>} : memref<36x256xf32, #tpu.memory_space<vmem>>, vector<4x256xf32>,
    %c0_236 = arith.constant 0 : index
    %c0_237 = arith.constant 0 : index
    %211 = vector.load %arg5[%c0_236, %c0_237] : memref<4x36xf32, #tpu.memory_space<vmem>>, vector<4x36xf32>
    %c0_238 = arith.constant 0 : index
    %c0_239 = arith.constant 0 : index
    %212 = vector.load %arg8[%c0_238, %c0_239] : memref<36x256xf32, #tpu.memory_space<vmem>>, vector<36x256xf32>
    %cst_240 = arith.constant dense<0.000000e+00> : vector<4x256xf32>
    %213 = tpu.matmul %211, %212, %cst_240 {dimension_numbers = #tpu.dot_dimension_numbers<[1], [0], [0], [1], [0, 0, 1, 1], [], []>} : vector<4x36xf32>, vector<36x256xf32>, vector<4x256xf32> -> vector<4x256xf32>
    %cst_241 = arith.constant dense<0.000000e+00> : vector<4xf32>
    %214 = vector.multi_reduction <add>, %213, %cst_241 [1] : vector<4x256xf32> to vector<4xf32>
    %215 = vector.shape_cast %214 : vector<4xf32> to vector<4x1xf32>
    %216 = arith.mulf %213, %213 : vector<4x256xf32>
    %cst_242 = arith.constant dense<0.000000e+00> : vector<4xf32>
    %217 = vector.multi_reduction <add>, %216, %cst_242 [1] : vector<4x256xf32> to vector<4xf32>
    %218 = vector.shape_cast %217 : vector<4xf32> to vector<4x1xf32>
    %cst_243 = arith.constant 3.906250e-03 : f32
    %219 = vector.broadcast %cst_243 : f32 to vector<4x1xf32>
    %220 = arith.mulf %215, %219 : vector<4x1xf32>
    %cst_244 = arith.constant 3.906250e-03 : f32
    %221 = vector.broadcast %cst_244 : f32 to vector<4x1xf32>
    %222 = arith.mulf %218, %221 : vector<4x1xf32>
    %223 = arith.mulf %220, %220 : vector<4x1xf32>
    %224 = arith.subf %222, %223 : vector<4x1xf32>
    %cst_245 = arith.constant 0.000000e+00 : f32
    %225 = vector.broadcast %cst_245 : f32 to vector<4x1xf32>
    %226 = arith.maximumf %224, %225 : vector<4x1xf32>
    %227 = vector.broadcast %220 : vector<4x1xf32> to vector<4x256xf32>
    %228 = arith.subf %213, %227 : vector<4x256xf32>
    %cst_246 = arith.constant 9.99999974E-6 : f32
    %229 = vector.broadcast %cst_246 : f32 to vector<4x1xf32>
    %230 = arith.addf %226, %229 : vector<4x1xf32>
    %231 = math.rsqrt %230 : vector<4x1xf32>
    %232 = vector.broadcast %231 : vector<4x1xf32> to vector<4x256xf32>
    %233 = arith.mulf %228, %232 : vector<4x256xf32>
    %cst_247 = arith.constant 0.000000e+00 : f32
    %234 = vector.broadcast %cst_247 : f32 to vector<4x256xf32>
    %235 = arith.maximumf %233, %234 : vector<4x256xf32>
    %c0_248 = arith.constant 0 : index
    %c16_249 = arith.constant 16 : index
    %236 = vector.load %arg9[%c0_248, %c16_249] : memref<4x288xf32, #tpu.memory_space<vmem>>, vector<4x256xf32>
    tpu.vector_store %arg9[%c0_248, %c16_249], %235 {strides = array<i32>} : memref<4x288xf32, #tpu.memory_space<vmem>>, vector<4x256xf32>,
    %237 = vector.extract_strided_slice %235 {offsets = [0, 16], sizes = [4, 16], strides = [1, 1]} : vector<4x256xf32> to vector<4x16xf32>
    %c0_250 = arith.constant 0 : index
    %c0_251 = arith.constant 0 : index
    %238 = vector.load %arg9[%c0_250, %c0_251] : memref<4x288xf32, #tpu.memory_space<vmem>>, vector<4x16xf32>
    tpu.vector_store %arg9[%c0_250, %c0_251], %237 {strides = array<i32>} : memref<4x288xf32, #tpu.memory_space<vmem>>, vector<4x16xf32>,
    %239 = vector.extract_strided_slice %235 {offsets = [0, 224], sizes = [4, 16], strides = [1, 1]} : vector<4x256xf32> to vector<4x16xf32>
    %c0_252 = arith.constant 0 : index
    %c272_253 = arith.constant 272 : index
    %240 = vector.load %arg9[%c0_252, %c272_253] : memref<4x288xf32, #tpu.memory_space<vmem>>, vector<4x16xf32>
    tpu.vector_store %arg9[%c0_252, %c272_253], %239 {strides = array<i32>} : memref<4x288xf32, #tpu.memory_space<vmem>>, vector<4x16xf32>,
    %c0_254 = arith.constant 0 : index
    %c0_255 = arith.constant 0 : index
    %241 = vector.load %arg9[%c0_254, %c0_255] : memref<4x288xf32, #tpu.memory_space<vmem>>, vector<4x256xf32>
    %c0_256 = arith.constant 0 : index
    %c1_257 = arith.constant 1 : index
    %242 = vector.load %arg10[%c0_256, %c1_257] : memref<4x258xf32, #tpu.memory_space<vmem>>, vector<4x256xf32>
    tpu.vector_store %arg10[%c0_256, %c1_257], %241 {strides = array<i32>} : memref<4x258xf32, #tpu.memory_space<vmem>>, vector<4x256xf32>,
    %243 = vector.extract_strided_slice %241 {offsets = [0, 0], sizes = [4, 1], strides = [1, 1]} : vector<4x256xf32> to vector<4x1xf32>
    %c0_258 = arith.constant 0 : index
    %c0_259 = arith.constant 0 : index
    %244 = vector.load %arg10[%c0_258, %c0_259] : memref<4x258xf32, #tpu.memory_space<vmem>>, vector<4x1xf32>
    tpu.vector_store %arg10[%c0_258, %c0_259], %243 {strides = array<i32>} : memref<4x258xf32, #tpu.memory_space<vmem>>, vector<4x1xf32>,
    %245 = vector.extract_strided_slice %241 {offsets = [0, 255], sizes = [4, 1], strides = [1, 1]} : vector<4x256xf32> to vector<4x1xf32>
    %c0_260 = arith.constant 0 : index
    %c257_261 = arith.constant 257 : index
    %246 = vector.load %arg10[%c0_260, %c257_261] : memref<4x258xf32, #tpu.memory_space<vmem>>, vector<4x1xf32>
    tpu.vector_store %arg10[%c0_260, %c257_261], %245 {strides = array<i32>} : memref<4x258xf32, #tpu.memory_space<vmem>>, vector<4x1xf32>,
    %c0_262 = arith.constant 0 : index
    %c0_263 = arith.constant 0 : index
    %247 = vector.load %arg10[%c0_262, %c0_263] : memref<4x258xf32, #tpu.memory_space<vmem>>, vector<4x256xf32>
    %c0_264 = arith.constant 0 : index
    %c2_265 = arith.constant 2 : index
    %248 = vector.load %arg10[%c0_264, %c2_265] : memref<4x258xf32, #tpu.memory_space<vmem>>, vector<4x256xf32>
    %249 = arith.select %3, %248, %247 : vector<4x256xi1>, vector<4x256xf32>
    %c0_266 = arith.constant 0 : index
    %c0_267 = arith.constant 0 : index
    %250 = vector.load %arg8[%c0_266, %c0_267] : memref<36x256xf32, #tpu.memory_space<vmem>>, vector<4x256xf32>
    tpu.vector_store %arg8[%c0_266, %c0_267], %249 {strides = array<i32>} : memref<36x256xf32, #tpu.memory_space<vmem>>, vector<4x256xf32>,
    %c4_268 = arith.constant 4 : index
    %c0_269 = arith.constant 0 : index
    %251 = vector.load %arg8[%c4_268, %c0_269] : memref<36x256xf32, #tpu.memory_space<vmem>>, vector<4x256xf32>
    tpu.vector_store %arg8[%c4_268, %c0_269], %241 {strides = array<i32>} : memref<36x256xf32, #tpu.memory_space<vmem>>, vector<4x256xf32>,
    %c0_270 = arith.constant 0 : index
    %c2_271 = arith.constant 2 : index
    %252 = vector.load %arg10[%c0_270, %c2_271] : memref<4x258xf32, #tpu.memory_space<vmem>>, vector<4x256xf32>
    %c0_272 = arith.constant 0 : index
    %c0_273 = arith.constant 0 : index
    %253 = vector.load %arg10[%c0_272, %c0_273] : memref<4x258xf32, #tpu.memory_space<vmem>>, vector<4x256xf32>
    %254 = arith.select %7, %253, %252 : vector<4x256xi1>, vector<4x256xf32>
    %c8_274 = arith.constant 8 : index
    %c0_275 = arith.constant 0 : index
    %255 = vector.load %arg8[%c8_274, %c0_275] : memref<36x256xf32, #tpu.memory_space<vmem>>, vector<4x256xf32>
    tpu.vector_store %arg8[%c8_274, %c0_275], %254 {strides = array<i32>} : memref<36x256xf32, #tpu.memory_space<vmem>>, vector<4x256xf32>,
    %c0_276 = arith.constant 0 : index
    %c16_277 = arith.constant 16 : index
    %256 = vector.load %arg9[%c0_276, %c16_277] : memref<4x288xf32, #tpu.memory_space<vmem>>, vector<4x256xf32>
    %c0_278 = arith.constant 0 : index
    %c1_279 = arith.constant 1 : index
    %257 = vector.load %arg10[%c0_278, %c1_279] : memref<4x258xf32, #tpu.memory_space<vmem>>, vector<4x256xf32>
    tpu.vector_store %arg10[%c0_278, %c1_279], %256 {strides = array<i32>} : memref<4x258xf32, #tpu.memory_space<vmem>>, vector<4x256xf32>,
    %258 = vector.extract_strided_slice %256 {offsets = [0, 0], sizes = [4, 1], strides = [1, 1]} : vector<4x256xf32> to vector<4x1xf32>
    %c0_280 = arith.constant 0 : index
    %c0_281 = arith.constant 0 : index
    %259 = vector.load %arg10[%c0_280, %c0_281] : memref<4x258xf32, #tpu.memory_space<vmem>>, vector<4x1xf32>
    tpu.vector_store %arg10[%c0_280, %c0_281], %258 {strides = array<i32>} : memref<4x258xf32, #tpu.memory_space<vmem>>, vector<4x1xf32>,
    %260 = vector.extract_strided_slice %256 {offsets = [0, 255], sizes = [4, 1], strides = [1, 1]} : vector<4x256xf32> to vector<4x1xf32>
    %c0_282 = arith.constant 0 : index
    %c257_283 = arith.constant 257 : index
    %261 = vector.load %arg10[%c0_282, %c257_283] : memref<4x258xf32, #tpu.memory_space<vmem>>, vector<4x1xf32>
    tpu.vector_store %arg10[%c0_282, %c257_283], %260 {strides = array<i32>} : memref<4x258xf32, #tpu.memory_space<vmem>>, vector<4x1xf32>,
    %c0_284 = arith.constant 0 : index
    %c0_285 = arith.constant 0 : index
    %262 = vector.load %arg10[%c0_284, %c0_285] : memref<4x258xf32, #tpu.memory_space<vmem>>, vector<4x256xf32>
    %c0_286 = arith.constant 0 : index
    %c2_287 = arith.constant 2 : index
    %263 = vector.load %arg10[%c0_286, %c2_287] : memref<4x258xf32, #tpu.memory_space<vmem>>, vector<4x256xf32>
    %264 = arith.select %3, %263, %262 : vector<4x256xi1>, vector<4x256xf32>
    %c12_288 = arith.constant 12 : index
    %c0_289 = arith.constant 0 : index
    %265 = vector.load %arg8[%c12_288, %c0_289] : memref<36x256xf32, #tpu.memory_space<vmem>>, vector<4x256xf32>
    tpu.vector_store %arg8[%c12_288, %c0_289], %264 {strides = array<i32>} : memref<36x256xf32, #tpu.memory_space<vmem>>, vector<4x256xf32>,
    %c16_290 = arith.constant 16 : index
    %c0_291 = arith.constant 0 : index
    %266 = vector.load %arg8[%c16_290, %c0_291] : memref<36x256xf32, #tpu.memory_space<vmem>>, vector<4x256xf32>
    tpu.vector_store %arg8[%c16_290, %c0_291], %256 {strides = array<i32>} : memref<36x256xf32, #tpu.memory_space<vmem>>, vector<4x256xf32>,
    %c0_292 = arith.constant 0 : index
    %c2_293 = arith.constant 2 : index
    %267 = vector.load %arg10[%c0_292, %c2_293] : memref<4x258xf32, #tpu.memory_space<vmem>>, vector<4x256xf32>
    %c0_294 = arith.constant 0 : index
    %c0_295 = arith.constant 0 : index
    %268 = vector.load %arg10[%c0_294, %c0_295] : memref<4x258xf32, #tpu.memory_space<vmem>>, vector<4x256xf32>
    %269 = arith.select %7, %268, %267 : vector<4x256xi1>, vector<4x256xf32>
    %c20_296 = arith.constant 20 : index
    %c0_297 = arith.constant 0 : index
    %270 = vector.load %arg8[%c20_296, %c0_297] : memref<36x256xf32, #tpu.memory_space<vmem>>, vector<4x256xf32>
    tpu.vector_store %arg8[%c20_296, %c0_297], %269 {strides = array<i32>} : memref<36x256xf32, #tpu.memory_space<vmem>>, vector<4x256xf32>,
    %c0_298 = arith.constant 0 : index
    %c32_299 = arith.constant 32 : index
    %271 = vector.load %arg9[%c0_298, %c32_299] : memref<4x288xf32, #tpu.memory_space<vmem>>, vector<4x256xf32>
    %c0_300 = arith.constant 0 : index
    %c1_301 = arith.constant 1 : index
    %272 = vector.load %arg10[%c0_300, %c1_301] : memref<4x258xf32, #tpu.memory_space<vmem>>, vector<4x256xf32>
    tpu.vector_store %arg10[%c0_300, %c1_301], %271 {strides = array<i32>} : memref<4x258xf32, #tpu.memory_space<vmem>>, vector<4x256xf32>,
    %273 = vector.extract_strided_slice %271 {offsets = [0, 0], sizes = [4, 1], strides = [1, 1]} : vector<4x256xf32> to vector<4x1xf32>
    %c0_302 = arith.constant 0 : index
    %c0_303 = arith.constant 0 : index
    %274 = vector.load %arg10[%c0_302, %c0_303] : memref<4x258xf32, #tpu.memory_space<vmem>>, vector<4x1xf32>
    tpu.vector_store %arg10[%c0_302, %c0_303], %273 {strides = array<i32>} : memref<4x258xf32, #tpu.memory_space<vmem>>, vector<4x1xf32>,
    %275 = vector.extract_strided_slice %271 {offsets = [0, 255], sizes = [4, 1], strides = [1, 1]} : vector<4x256xf32> to vector<4x1xf32>
    %c0_304 = arith.constant 0 : index
    %c257_305 = arith.constant 257 : index
    %276 = vector.load %arg10[%c0_304, %c257_305] : memref<4x258xf32, #tpu.memory_space<vmem>>, vector<4x1xf32>
    tpu.vector_store %arg10[%c0_304, %c257_305], %275 {strides = array<i32>} : memref<4x258xf32, #tpu.memory_space<vmem>>, vector<4x1xf32>,
    %c0_306 = arith.constant 0 : index
    %c0_307 = arith.constant 0 : index
    %277 = vector.load %arg10[%c0_306, %c0_307] : memref<4x258xf32, #tpu.memory_space<vmem>>, vector<4x256xf32>
    %c0_308 = arith.constant 0 : index
    %c2_309 = arith.constant 2 : index
    %278 = vector.load %arg10[%c0_308, %c2_309] : memref<4x258xf32, #tpu.memory_space<vmem>>, vector<4x256xf32>
    %279 = arith.select %3, %278, %277 : vector<4x256xi1>, vector<4x256xf32>
    %c24_310 = arith.constant 24 : index
    %c0_311 = arith.constant 0 : index
    %280 = vector.load %arg8[%c24_310, %c0_311] : memref<36x256xf32, #tpu.memory_space<vmem>>, vector<4x256xf32>
    tpu.vector_store %arg8[%c24_310, %c0_311], %279 {strides = array<i32>} : memref<36x256xf32, #tpu.memory_space<vmem>>, vector<4x256xf32>,
    %c28_312 = arith.constant 28 : index
    %c0_313 = arith.constant 0 : index
    %281 = vector.load %arg8[%c28_312, %c0_313] : memref<36x256xf32, #tpu.memory_space<vmem>>, vector<4x256xf32>
    tpu.vector_store %arg8[%c28_312, %c0_313], %271 {strides = array<i32>} : memref<36x256xf32, #tpu.memory_space<vmem>>, vector<4x256xf32>,
    %c0_314 = arith.constant 0 : index
    %c2_315 = arith.constant 2 : index
    %282 = vector.load %arg10[%c0_314, %c2_315] : memref<4x258xf32, #tpu.memory_space<vmem>>, vector<4x256xf32>
    %c0_316 = arith.constant 0 : index
    %c0_317 = arith.constant 0 : index
    %283 = vector.load %arg10[%c0_316, %c0_317] : memref<4x258xf32, #tpu.memory_space<vmem>>, vector<4x256xf32>
    %284 = arith.select %7, %283, %282 : vector<4x256xi1>, vector<4x256xf32>
    %c32_318 = arith.constant 32 : index
    %c0_319 = arith.constant 0 : index
    %285 = vector.load %arg8[%c32_318, %c0_319] : memref<36x256xf32, #tpu.memory_space<vmem>>, vector<4x256xf32>
    tpu.vector_store %arg8[%c32_318, %c0_319], %284 {strides = array<i32>} : memref<36x256xf32, #tpu.memory_space<vmem>>, vector<4x256xf32>,
    %c0_320 = arith.constant 0 : index
    %c0_321 = arith.constant 0 : index
    %286 = vector.load %arg6[%c0_320, %c0_321] : memref<4x36xf32, #tpu.memory_space<vmem>>, vector<4x36xf32>
    %c0_322 = arith.constant 0 : index
    %c0_323 = arith.constant 0 : index
    %287 = vector.load %arg8[%c0_322, %c0_323] : memref<36x256xf32, #tpu.memory_space<vmem>>, vector<36x256xf32>
    %cst_324 = arith.constant dense<0.000000e+00> : vector<4x256xf32>
    %288 = tpu.matmul %286, %287, %cst_324 {dimension_numbers = #tpu.dot_dimension_numbers<[1], [0], [0], [1], [0, 0, 1, 1], [], []>} : vector<4x36xf32>, vector<36x256xf32>, vector<4x256xf32> -> vector<4x256xf32>
    %cst_325 = arith.constant dense<0.000000e+00> : vector<4xf32>
    %289 = vector.multi_reduction <add>, %288, %cst_325 [1] : vector<4x256xf32> to vector<4xf32>
    %290 = vector.shape_cast %289 : vector<4xf32> to vector<4x1xf32>
    %291 = arith.mulf %288, %288 : vector<4x256xf32>
    %cst_326 = arith.constant dense<0.000000e+00> : vector<4xf32>
    %292 = vector.multi_reduction <add>, %291, %cst_326 [1] : vector<4x256xf32> to vector<4xf32>
    %293 = vector.shape_cast %292 : vector<4xf32> to vector<4x1xf32>
    %cst_327 = arith.constant 3.906250e-03 : f32
    %294 = vector.broadcast %cst_327 : f32 to vector<4x1xf32>
    %295 = arith.mulf %290, %294 : vector<4x1xf32>
    %cst_328 = arith.constant 3.906250e-03 : f32
    %296 = vector.broadcast %cst_328 : f32 to vector<4x1xf32>
    %297 = arith.mulf %293, %296 : vector<4x1xf32>
    %298 = arith.mulf %295, %295 : vector<4x1xf32>
    %299 = arith.subf %297, %298 : vector<4x1xf32>
    %cst_329 = arith.constant 0.000000e+00 : f32
    %300 = vector.broadcast %cst_329 : f32 to vector<4x1xf32>
    %301 = arith.maximumf %299, %300 : vector<4x1xf32>
    %302 = vector.broadcast %295 : vector<4x1xf32> to vector<4x256xf32>
    %303 = arith.subf %288, %302 : vector<4x256xf32>
    %cst_330 = arith.constant 9.99999974E-6 : f32
    %304 = vector.broadcast %cst_330 : f32 to vector<4x1xf32>
    %305 = arith.addf %301, %304 : vector<4x1xf32>
    %306 = math.rsqrt %305 : vector<4x1xf32>
    %307 = vector.broadcast %306 : vector<4x1xf32> to vector<4x256xf32>
    %308 = arith.mulf %303, %307 : vector<4x256xf32>
    %309 = arith.addf %11, %308 : vector<4x256xf32>
    %c0_331 = arith.constant 0 : index
    %c0_332 = arith.constant 0 : index
    %c0_333 = arith.constant 0 : index
    %310 = vector.load %arg7[%c0_331, %c0_332, %c0_333] : memref<1x8x256xf32, #tpu.memory_space<vmem>>, vector<1x4x256xf32>
    %311 = vector.shape_cast %310 : vector<1x4x256xf32> to vector<4x256xf32>
    %312 = vector.shape_cast %160 : vector<4x256xf32> to vector<1x4x256xf32>
    tpu.vector_store %arg7[%c0_331, %c0_332, %c0_333], %312 {strides = array<i32>} : memref<1x8x256xf32, #tpu.memory_space<vmem>>, vector<1x4x256xf32>,
    %c0_334 = arith.constant 0 : index
    %c4_335 = arith.constant 4 : index
    %c0_336 = arith.constant 0 : index
    %313 = vector.load %arg7[%c0_334, %c4_335, %c0_336] : memref<1x8x256xf32, #tpu.memory_space<vmem>>, vector<1x4x256xf32>
    %314 = vector.shape_cast %313 : vector<1x4x256xf32> to vector<4x256xf32>
    %315 = vector.shape_cast %309 : vector<4x256xf32> to vector<1x4x256xf32>
    tpu.vector_store %arg7[%c0_334, %c4_335, %c0_336], %315 {strides = array<i32>} : memref<1x8x256xf32, #tpu.memory_space<vmem>>, vector<1x4x256xf32>,
    return
  }
  func.func @transform_0(%arg0: i32) -> (i32, i32, i32) {
    %c0_i32 = arith.constant 0 : i32
    %c0_i32_0 = arith.constant 0 : i32
    %c0_i32_1 = arith.constant 0 : i32
    return %arg0, %c0_i32, %c0_i32_0 : i32, i32, i32
  }
  func.func @transform_1(%arg0: i32) -> (i32, i32, i32) {
    %c0_i32 = arith.constant 0 : i32
    %c0_i32_0 = arith.constant 0 : i32
    %c0_i32_1 = arith.constant 0 : i32
    %c0_i32_2 = arith.constant 0 : i32
    return %c0_i32, %c0_i32_0, %c0_i32_1 : i32, i32, i32
  }
  func.func @transform_2(%arg0: i32) -> (i32, i32) {
    %c0_i32 = arith.constant 0 : i32
    %c0_i32_0 = arith.constant 0 : i32
    %c0_i32_1 = arith.constant 0 : i32
    return %c0_i32, %c0_i32_0 : i32, i32
  }
  func.func @transform_3(%arg0: i32) -> (i32, i32) {
    %c0_i32 = arith.constant 0 : i32
    %c0_i32_0 = arith.constant 0 : i32
    %c0_i32_1 = arith.constant 0 : i32
    return %c0_i32, %c0_i32_0 : i32, i32
  }
  func.func @transform_4(%arg0: i32) -> (i32, i32) {
    %c0_i32 = arith.constant 0 : i32
    %c0_i32_0 = arith.constant 0 : i32
    %c0_i32_1 = arith.constant 0 : i32
    return %c0_i32, %c0_i32_0 : i32, i32
  }
  func.func @transform_5(%arg0: i32) -> (i32, i32) {
    %c0_i32 = arith.constant 0 : i32
    %c0_i32_0 = arith.constant 0 : i32
    %c0_i32_1 = arith.constant 0 : i32
    return %c0_i32, %c0_i32_0 : i32, i32
  }
  func.func @transform_6(%arg0: i32) -> (i32, i32, i32) {
    %c0_i32 = arith.constant 0 : i32
    %c0_i32_0 = arith.constant 0 : i32
    %c0_i32_1 = arith.constant 0 : i32
    return %arg0, %c0_i32, %c0_i32_0 : i32, i32, i32
  }
}

</mosaic_0001>

<llo_original>
// kernel: reversible_resnet_block.1
$region0: #{reversible_resnet_block.1}
  #allocation0 [shape = 'u32[]', space=smem, size = 0x4, offset = 0x4, fixed_abs, tag = 'smem constant byte address 0x4 - core index']
  #allocation1 [shape = 'u32[144,128]{1,0:T(1,128)}', space=vmem, size = 0x12000, scoped, tag = 'internal scratch']
  #allocation2 [shape = 'f32[36,256]{1,0:T(8,128)}', space=vmem, size = 0xa000, scoped, tag = 'scratch operand']
  #allocation3 [shape = 'f32[4,288]{1,0:T(4,128)}', space=vmem, size = 0x1800, scoped, tag = 'scratch operand']
  #allocation4 [shape = 'f32[4,258]{1,0:T(4,128)}', space=vmem, size = 0x1800, scoped, tag = 'scratch operand']
  %s0 = inlined_call_operand.vmem [shape: f32[2,8,256], index: 0, kind: input, shape index: {}]
  %s1 = inlined_call_operand.vmem [shape: f32[2,4,256], index: 1, kind: input, shape index: {}]
  %s2 = inlined_call_operand.vmem [shape: f32[4,36], index: 2, kind: input, shape index: {}]
  %s3 = inlined_call_operand.vmem [shape: f32[4,36], index: 3, kind: input, shape index: {}]
  %s4 = inlined_call_operand.vmem [shape: f32[4,36], index: 4, kind: input, shape index: {}]
  %s5 = inlined_call_operand.vmem [shape: f32[4,36], index: 5, kind: input, shape index: {}]
  %s6 = inlined_call_operand.vmem [shape: f32[2,8,256], index: 6, kind: output, shape index: {}]
  %s7 = sld [smem:[#allocation0]]
  $region57: #{reversible_resnet_block.1} parent=0
    _
  %s9 = ssub.s32 1, %s7
  %s10 = scalar_select 0, %s9, %s7
  loop: start=0, step=1, limit=4
  $region2: #{reversible_resnet_block.1} parent=0 // loop_pre_header
    _
  $region3: #{reversible_resnet_block.1} parent=0 // loop_header
    %s12 = sphi 0, %s16
    %p13 = scmp.ge.s32.totalorder %s12, 4
    %s22 = sphi 0, %s24
    %s25 = sphi 0, %s22
    %s26 = sphi 0, %s25
    %s42 = sphi 0, %s26
    %s46 = sphi 0, %s46
    %s48 = sphi 0, %s46
    %s49 = sphi 0, %s48
    %s63 = sphi 0, %s49
    %s67 = sphi 0, %s67
    %s69 = sphi 0, %s67
    %s70 = sphi 0, %s69
    %s84 = sphi 0, %s70
    %s88 = sphi 0, %s88
    %s90 = sphi 0, %s88
    %s91 = sphi 0, %s90
    %s105 = sphi 0, %s91
    %s109 = sphi 0, %s109
    %s111 = sphi 0, %s109
    %s112 = sphi 0, %s111
    %s126 = sphi 0, %s112
    %s130 = sphi 0, %s130
    %s132 = sphi 0, %s130
    %s133 = sphi 0, %s132
    %s147 = sphi 0, %s133
    %s153 = sphi 0, %s155
    %s156 = sphi 0, %s153
    %s157 = sphi 0, %s156
    %s173 = sphi 0, %s157
  $region4: #{reversible_resnet_block.1} parent=0 // loop_header_branch
    %15 = sbr.rel (%p13) target = $region8
  $region5: #{reversible_resnet_block.1} parent=0 // loop_body
    %s17 = ssub.s32 %s12, 1
    %s18 = ssub.s32 %s12, 2
    %s19 = sadd.s32 %s12, 1
    %s20 = ssub.s32 %s12, %s19
    %p21 = scmp.eq.s32.totalorder %s20, 0
    %s23 = sadd.s32 %s22, 1
    %s24 = scalar_select %p21, %s22, %s23
    %p27 = pneg %p21
    %p28 = scmp.eq.s32.totalorder %s12, 1
    %p29 = por %p27, %p28
    %p30 = scmp.ne.s32.totalorder %s22, %s25
    %p31 = scmp.eq.s32.totalorder %s12, 0
    %p32 = por %p30, %p31
    %p33 = scmp.ne.s32.totalorder %s22, %s25
    %p34 = scmp.eq.s32.totalorder %s17, 1
    %p35 = por %p33, %p34
    %p36 = scmp.ne.s32.totalorder %s25, %s26
    %p37 = scmp.eq.s32.totalorder %s17, 0
    %p38 = por %p36, %p37
    %p39 = scmp.ne.s32.totalorder %s25, %s26
    %p40 = scmp.eq.s32.totalorder %s18, 1
    %p41 = por %p39, %p40
    %p43 = scmp.ne.s32.totalorder %s26, %s42
    %p44 = scmp.eq.s32.totalorder %s18, 0
    %p45 = por %p43, %p44
    %s47 = sadd.s32 %s46, 1
    %p50 = scmp.eq.s32.totalorder %s12, 1
    %p51 = scmp.ne.s32.totalorder %s46, %s48
    %p52 = scmp.eq.s32.totalorder %s12, 0
    %p53 = por %p51, %p52
    %p54 = scmp.ne.s32.totalorder %s46, %s48
    %p55 = scmp.eq.s32.totalorder %s17, 1
    %p56 = por %p54, %p55
    %p57 = scmp.ne.s32.totalorder %s48, %s49
    %p58 = scmp.eq.s32.totalorder %s17, 0
    %p59 = por %p57, %p58
    %p60 = scmp.ne.s32.totalorder %s48, %s49
    %p61 = scmp.eq.s32.totalorder %s18, 1
    %p62 = por %p60, %p61
    %p64 = scmp.ne.s32.totalorder %s49, %s63
    %p65 = scmp.eq.s32.totalorder %s18, 0
    %p66 = por %p64, %p65
    %s68 = sadd.s32 %s67, 1
    %p71 = scmp.eq.s32.totalorder %s12, 1
    %p72 = scmp.ne.s32.totalorder %s67, %s69
    %p73 = scmp.eq.s32.totalorder %s12, 0
    %p74 = por %p72, %p73
    %p75 = scmp.ne.s32.totalorder %s67, %s69
    %p76 = scmp.eq.s32.totalorder %s17, 1
    %p77 = por %p75, %p76
    %p78 = scmp.ne.s32.totalorder %s69, %s70
    %p79 = scmp.eq.s32.totalorder %s17, 0
    %p80 = por %p78, %p79
    %p81 = scmp.ne.s32.totalorder %s69, %s70
    %p82 = scmp.eq.s32.totalorder %s18, 1
    %p83 = por %p81, %p82
    %p85 = scmp.ne.s32.totalorder %s70, %s84
    %p86 = scmp.eq.s32.totalorder %s18, 0
    %p87 = por %p85, %p86
    %s89 = sadd.s32 %s88, 1
    %p92 = scmp.eq.s32.totalorder %s12, 1
    %p93 = scmp.ne.s32.totalorder %s88, %s90
    %p94 = scmp.eq.s32.totalorder %s12, 0
    %p95 = por %p93, %p94
    %p96 = scmp.ne.s32.totalorder %s88, %s90
    %p97 = scmp.eq.s32.totalorder %s17, 1
    %p98 = por %p96, %p97
    %p99 = scmp.ne.s32.totalorder %s90, %s91
    %p100 = scmp.eq.s32.totalorder %s17, 0
    %p101 = por %p99, %p100
    %p102 = scmp.ne.s32.totalorder %s90, %s91
    %p103 = scmp.eq.s32.totalorder %s18, 1
    %p104 = por %p102, %p103
    %p106 = scmp.ne.s32.totalorder %s91, %s105
    %p107 = scmp.eq.s32.totalorder %s18, 0
    %p108 = por %p106, %p107
    %s110 = sadd.s32 %s109, 1
    %p113 = scmp.eq.s32.totalorder %s12, 1
    %p114 = scmp.ne.s32.totalorder %s109, %s111
    %p115 = scmp.eq.s32.totalorder %s12, 0
    %p116 = por %p114, %p115
    %p117 = scmp.ne.s32.totalorder %s109, %s111
    %p118 = scmp.eq.s32.totalorder %s17, 1
    %p119 = por %p117, %p118
    %p120 = scmp.ne.s32.totalorder %s111, %s112
    %p121 = scmp.eq.s32.totalorder %s17, 0
    %p122 = por %p120, %p121
    %p123 = scmp.ne.s32.totalorder %s111, %s112
    %p124 = scmp.eq.s32.totalorder %s18, 1
    %p125 = por %p123, %p124
    %p127 = scmp.ne.s32.totalorder %s112, %s126
    %p128 = scmp.eq.s32.totalorder %s18, 0
    %p129 = por %p127, %p128
    %s131 = sadd.s32 %s130, 1
    %p134 = scmp.eq.s32.totalorder %s12, 1
    %p135 = scmp.ne.s32.totalorder %s130, %s132
    %p136 = scmp.eq.s32.totalorder %s12, 0
    %p137 = por %p135, %p136
    %p138 = scmp.ne.s32.totalorder %s130, %s132
    %p139 = scmp.eq.s32.totalorder %s17, 1
    %p140 = por %p138, %p139
    %p141 = scmp.ne.s32.totalorder %s132, %s133
    %p142 = scmp.eq.s32.totalorder %s17, 0
    %p143 = por %p141, %p142
    %p144 = scmp.ne.s32.totalorder %s132, %s133
    %p145 = scmp.eq.s32.totalorder %s18, 1
    %p146 = por %p144, %p145
    %p148 = scmp.ne.s32.totalorder %s133, %s147
    %p149 = scmp.eq.s32.totalorder %s18, 0
    %p150 = por %p148, %p149
    %s151 = ssub.s32 %s12, %s19
    %p152 = scmp.eq.s32.totalorder %s151, 0
    %s154 = sadd.s32 %s153, 1
    %s155 = scalar_select %p152, %s153, %s154
    %p158 = pneg %p152
    %p159 = scmp.eq.s32.totalorder %s12, 1
    %p160 = por %p158, %p159
    %p161 = scmp.ne.s32.totalorder %s153, %s156
    %p162 = scmp.eq.s32.totalorder %s12, 0
    %p163 = por %p161, %p162
    %p164 = scmp.ne.s32.totalorder %s153, %s156
    %p165 = scmp.eq.s32.totalorder %s17, 1
    %p166 = por %p164, %p165
    %p167 = scmp.ne.s32.totalorder %s156, %s157
    %p168 = scmp.eq.s32.totalorder %s17, 0
    %p169 = por %p167, %p168
    %p170 = scmp.ne.s32.totalorder %s156, %s157
    %p171 = scmp.eq.s32.totalorder %s18, 1
    %p172 = por %p170, %p171
    %p174 = scmp.ne.s32.totalorder %s157, %s173
    %p175 = scmp.eq.s32.totalorder %s18, 0
    %p176 = por %p174, %p175
    %p177 = scmp.le.s32.totalorder 1, %s12
    %p178 = scmp.lt.s32.totalorder %s12, 3
    %p179 = pnand %p177, %p178
    %p180 = pneg %p179
    // Predicated region
    $region9: #{reversible_resnet_block.1} parent=5 // pred_check
      _
    $region10: #{reversible_resnet_block.1} parent=5 // pred_check_branch
      %182 = sbr.rel (%p179) target = $region12
    $region11: #{reversible_resnet_block.1} parent=5 // pred_region
      %s183 = ssub.s32 %s12, 1
      // Predicated region
      $region13: #{reversible_resnet_block.1} parent=11 // pred_check
        %p184 = pneg %p59
      $region14: #{reversible_resnet_block.1} parent=11 // pred_check_branch
        %186 = sbr.rel (%p184) target = $region16
      $region15: #{reversible_resnet_block.1} parent=11 // pred_region
        _
      $region16: #{reversible_resnet_block.1} parent=11 // pred_fallthru
        _
      // Predicated region
      $region17: #{reversible_resnet_block.1} parent=11 // pred_check
        %p187 = pneg %p80
      $region18: #{reversible_resnet_block.1} parent=11 // pred_check_branch
        %189 = sbr.rel (%p187) target = $region20
      $region19: #{reversible_resnet_block.1} parent=11 // pred_region
        _
      $region20: #{reversible_resnet_block.1} parent=11 // pred_fallthru
        _
      // Predicated region
      $region21: #{reversible_resnet_block.1} parent=11 // pred_check
        %p190 = pneg %p101
      $region22: #{reversible_resnet_block.1} parent=11 // pred_check_branch
        %192 = sbr.rel (%p190) target = $region24
      $region23: #{reversible_resnet_block.1} parent=11 // pred_region
        _
      $region24: #{reversible_resnet_block.1} parent=11 // pred_fallthru
        _
      // Predicated region
      $region25: #{reversible_resnet_block.1} parent=11 // pred_check
        %p193 = pneg %p122
      $region26: #{reversible_resnet_block.1} parent=11 // pred_check_branch
        %195 = sbr.rel (%p193) target = $region28
      $region27: #{reversible_resnet_block.1} parent=11 // pred_region
        _
      $region28: #{reversible_resnet_block.1} parent=11 // pred_fallthru
        _
      // Predicated region
      $region29: #{reversible_resnet_block.1} parent=11 // pred_check
        %p196 = pneg %p143
      $region30: #{reversible_resnet_block.1} parent=11 // pred_check_branch
        %198 = sbr.rel (%p196) target = $region32
      $region31: #{reversible_resnet_block.1} parent=11 // pred_region
        _
      $region32: #{reversible_resnet_block.1} parent=11 // pred_fallthru
        _
    $region12: #{reversible_resnet_block.1} parent=5 // pred_fallthru
      _
    %p199 = scmp.lt.s32.totalorder %s12, 2
    // Predicated region
    $region33: #{reversible_resnet_block.1} parent=5 // pred_check
      %p200 = pneg %p199
    $region34: #{reversible_resnet_block.1} parent=5 // pred_check_branch
      %202 = sbr.rel (%p200) target = $region36
    $region35: #{reversible_resnet_block.1} parent=5 // pred_region
      // Predicated region
      $region37: #{reversible_resnet_block.1} parent=35 // pred_check
        %p203 = pneg %p32
      $region38: #{reversible_resnet_block.1} parent=35 // pred_check_branch
        %205 = sbr.rel (%p203) target = $region40
      $region39: #{reversible_resnet_block.1} parent=35 // pred_region
        %p206 = scmp.lt.s32.totalorder %s12, 1
        %s207 = scalar_select %p206, %s12, 1
        %s208 = smul.addr %s207, 2
        %s209 = smul.addr %s208, 8
        %s210 = scalar_lea.vmem %s0, %s209
      $region40: #{reversible_resnet_block.1} parent=35 // pred_fallthru
        _
    $region36: #{reversible_resnet_block.1} parent=5 // pred_fallthru
      _
    %p211 = scmp.le.s32.totalorder 1, %s12
    %p212 = scmp.lt.s32.totalorder %s12, 3
    %p213 = pnand %p211, %p212
    %p214 = pneg %p213
    // Predicated region
    $region41: #{reversible_resnet_block.1} parent=5 // pred_check
      _
    $region42: #{reversible_resnet_block.1} parent=5 // pred_check_branch
      %216 = sbr.rel (%p213) target = $region44
    $region43: #{reversible_resnet_block.1} parent=5 // pred_region
      %s217 = ssub.s32 %s12, 1
      %p218 = scmp.lt.s32.totalorder %s17, 1
      %s219 = scalar_select %p218, %s17, 1
      %s220 = smul.addr %s219, 2
      %s221 = smul.addr %s220, 8
      %s222 = scalar_lea.vmem %s0, %s221
      %p223 = pneg %p38
      %p224 = pneg %p35
      %p225 = pneg %p59
      %p226 = pneg %p56
      %p227 = pneg %p80
      %p228 = pneg %p77
      %p229 = pneg %p101
      %p230 = pneg %p98
      %p231 = pneg %p122
      %p232 = pneg %p119
      %p233 = pneg %p143
      %p234 = pneg %p140
      %p235 = pneg %p169
      %p236 = pneg %p166
      %p237 = scmp.lt.s32.totalorder %s17, 1
      %s238 = scalar_select %p237, %s17, 1
      %s239 = smul.addr %s238, 2
      %s240 = smul.addr %s239, 8
      %s241 = scalar_lea.vmem %s6, %s240
      %p242 = scmp.lt.s32.totalorder %s17, 1
      %s243 = scalar_select %p242, %s17, 1
      %s244 = smul.addr %s243, 2
      %s245 = smul.addr %s244, 8
      %s246 = scalar_lea.vmem %s0, %s245
      %p247 = scmp.lt.s32.totalorder %s17, 1
      %s248 = scalar_select %p247, %s17, 1
      %s249 = smul.addr %s248, 2
      %s250 = smul.addr %s249, 8
      %s251 = scalar_lea.vmem %s6, %s250
      %v252 = vld [vmem:[%s1] sm:$0xff]
      %vm253 = vcmp.ne.f32.partialorder %v252, 0.0
      %s254 = scalar_lea.vmem %s1, 8
      %v255 = vld [vmem:[%s254] sm:$0xff]
      %vm256 = vcmp.ne.f32.partialorder %v255, 0.0
      %v257 = vld [vmem:[%s246] sm:$0xff]
      %v258 = vld [vmem:[%s246 + $0x8] sm:$0xff]
      %v261 = vcombine.high %v257, %v258
      %262 = vrot.lane.b32.xlu0 %v261, 16
      %v263 = vpop.permute.xlu0 %262
      %v264 = vrot.slane %v263, 4
      %vm265 = vcmask 130048
      %v266 = vsel %vm265, %v264, %v263
      %vm269 = vcmask 1043584
      %vm270 = vcmask 1047556
      %vm271 = vmor %vm270, %vm269
      %272 = vst.msk [vmem:[#allocation3] sm:$0xff] %vm271, %v266
      %vm273 = vcmask 125952
      %274 = vst.msk [vmem:[#allocation3 + $0x8] sm:$0xf] %vm273, %v264
      %v275 = vcombine.high %v257, %v257
      %276 = vrot.lane.b32.xlu0 %v275, 112
      %v277 = vpop.permute.xlu0 %276
      %279 = vst.msk [vmem:[#allocation3] sm:$0xf] %vm273, %v277
      %v280 = vcombine.high %v258, %v258
      %281 = vrot.lane.b32.xlu0 %v280, 48
      %v282 = vpop.permute.xlu0 %281
      %vm284 = vcmask 257152
      %285 = vst.msk [vmem:[#allocation3 + $0x8] sm:$0xf] %vm284, %v282
      %v286 = vld [vmem:[#allocation3] sm:$0xff]
      %288 = vrot.lane.b32.xlu0 %v286, 1
      %v289 = vpop.permute.xlu0 %288
      %v290 = vrot.slane %v289, 4
      %vm291 = vcmask 7168
      %v292 = vsel %vm291, %v290, %v289
      %vm295 = vcmask 1043464
      %vm296 = vmor %vm270, %vm295
      %297 = vst.msk [vmem:[#allocation4] sm:$0xff] %vm296, %v292
      %vm298 = vcmask 3072
      %299 = vst.msk [vmem:[#allocation4 + $0x8] sm:$0xf] %vm298, %v290
      %300 = vst.msk [vmem:[#allocation4] sm:$0xf] %vm298, %v286
      %301 = vrot.lane.b32.xlu0 %v286, 2
      %v302 = vpop.permute.xlu0 %301
      %v303 = vrot.slane %v302, 4
      %vm305 = vcmask 11272
      %306 = vst.msk [vmem:[#allocation4 + $0x8] sm:$0xf] %vm305, %v303
      %v307 = vld [vmem:[#allocation4] sm:$0xff]
      %v308 = vld [vmem:[#allocation4 + $0x8] sm:$0xf]
      %311 = vrot.lane.b32.xlu0 %v307, 126
      %v312 = vpop.permute.xlu0 %311
      %313 = vrot.lane.b32.xlu0 %v308, 126
      %v314 = vpop.permute.xlu0 %313
      %v315 = vrot.slane %v312, 4
      %v316 = vrot.slane %v314, 4
      %vm317 = vcmask 1043456
      %v318 = vsel %vm317, %v315, %v316
      %vm319 = vcmask 1031168
      %v320 = vsel %vm319, %v312, %v318
      %v322 = vsel %vm253, %v320, %v307
      %v324 = vcombine.high %v322, %v322
      %326 = vst [vmem:[#allocation2] sm:$0xf] %v322
      %327 = vst [vmem:[#allocation2 + $0x8] sm:$0xf] %v324
      %v328 = vcombine.low %v286, %v286
      %330 = vst [vmem:[#allocation2] sm:$0xf0] %v328
      %331 = vst [vmem:[#allocation2 + $0x8] sm:$0xf0] %v286
      %v332 = vld [vmem:[#allocation4] sm:$0xff]
      %v333 = vld [vmem:[#allocation4 + $0x8] sm:$0xf]
      %336 = vrot.lane.b32.xlu0 %v332, 126
      %v337 = vpop.permute.xlu0 %336
      %338 = vrot.lane.b32.xlu0 %v333, 126
      %v339 = vpop.permute.xlu0 %338
      %v340 = vrot.slane %v337, 4
      %v341 = vrot.slane %v339, 4
      %v342 = vsel %vm317, %v340, %v341
      %v343 = vsel %vm319, %v337, %v342
      %v345 = vsel %vm256, %v332, %v343
      %v347 = vcombine.high %v345, %v345
      %349 = vst [vmem:[#allocation2 + $0x10] sm:$0xf] %v345
      %350 = vst [vmem:[#allocation2 + $0x18] sm:$0xf] %v347
      %v351 = vld [vmem:[#allocation3] sm:$0xff]
      %v352 = vld [vmem:[#allocation3 + $0x8] sm:$0xf]
      %355 = vrot.lane.b32.xlu0 %v351, 113
      %v356 = vpop.permute.xlu0 %355
      %357 = vrot.lane.b32.xlu0 %v352, 113
      %v358 = vpop.permute.xlu0 %357
      %v359 = vrot.slane %v356, 4
      %v360 = vrot.slane %v358, 4
      %v361 = vsel %vm317, %v359, %v360
      %vm362 = vcmask 924672
      %v363 = vsel %vm362, %v356, %v361
      %366 = vst.msk [vmem:[#allocation4] sm:$0xff] %vm296, %v363
      %367 = vst.msk [vmem:[#allocation4 + $0x8] sm:$0xf] %vm298, %v358
      %368 = vrot.lane.b32.xlu0 %v351, 112
      %v369 = vpop.permute.xlu0 %368
      %371 = vst.msk [vmem:[#allocation4] sm:$0xf] %vm298, %v369
      %372 = vrot.lane.b32.xlu0 %v352, 114
      %v373 = vpop.permute.xlu0 %372
      %375 = vst.msk [vmem:[#allocation4 + $0x8] sm:$0xf] %vm305, %v373
      %v376 = vld [vmem:[#allocation4] sm:$0xff]
      %v377 = vld [vmem:[#allocation4 + $0x8] sm:$0xf]
      %380 = vrot.lane.b32.xlu0 %v376, 126
      %v381 = vpop.permute.xlu0 %380
      %382 = vrot.lane.b32.xlu0 %v377, 126
      %v383 = vpop.permute.xlu0 %382
      %v384 = vrot.slane %v381, 4
      %v385 = vrot.slane %v383, 4
      %v386 = vsel %vm317, %v384, %v385
      %v387 = vsel %vm319, %v381, %v386
      %v389 = vsel %vm253, %v387, %v376
      %v391 = vcombine.low %v389, %v389
      %393 = vst [vmem:[#allocation2 + $0x10] sm:$0xf0] %v391
      %394 = vst [vmem:[#allocation2 + $0x18] sm:$0xf0] %v389
      %v395 = vcombine.high %v351, %v351
      %396 = vrot.lane.b32.xlu0 %v395, 112
      %v397 = vpop.permute.xlu0 %396
      %398 = vrot.lane.b32.xlu0 %v352, 112
      %v399 = vpop.permute.xlu0 %398
      %vm400 = vcmask 916480
      %v401 = vsel %vm400, %v369, %v397
      %v402 = vsel %vm400, %v397, %v399
      %405 = vst [vmem:[#allocation2 + $0x20] sm:$0xf] %v401
      %406 = vst [vmem:[#allocation2 + $0x28] sm:$0xf] %v402
      %v407 = vld [vmem:[#allocation4] sm:$0xff]
      %v408 = vld [vmem:[#allocation4 + $0x8] sm:$0xf]
      %411 = vrot.lane.b32.xlu0 %v407, 126
      %v412 = vpop.permute.xlu0 %411
      %413 = vrot.lane.b32.xlu0 %v408, 126
      %v414 = vpop.permute.xlu0 %413
      %v415 = vrot.slane %v412, 4
      %v416 = vrot.slane %v414, 4
      %v417 = vsel %vm317, %v415, %v416
      %v418 = vsel %vm319, %v412, %v417
      %v420 = vsel %vm256, %v407, %v418
      %v422 = vcombine.low %v420, %v420
      %424 = vst [vmem:[#allocation2 + $0x20] sm:$0xf0] %v422
      %425 = vst [vmem:[#allocation2 + $0x28] sm:$0xf0] %v420
      %v426 = vld [vmem:[#allocation3] sm:$0xff]
      %v427 = vld [vmem:[#allocation3 + $0x8] sm:$0xf]
      %430 = vrot.lane.b32.xlu0 %v426, 97
      %v431 = vpop.permute.xlu0 %430
      %432 = vrot.lane.b32.xlu0 %v427, 97
      %v433 = vpop.permute.xlu0 %432
      %v434 = vrot.slane %v431, 4
      %v435 = vrot.slane %v433, 4
      %v436 = vsel %vm317, %v434, %v435
      %vm437 = vcmask 793600
      %v438 = vsel %vm437, %v431, %v436
      %441 = vst.msk [vmem:[#allocation4] sm:$0xff] %vm296, %v438
      %442 = vst.msk [vmem:[#allocation4 + $0x8] sm:$0xf] %vm298, %v433
      %443 = vrot.lane.b32.xlu0 %v426, 96
      %v444 = vpop.permute.xlu0 %443
      %446 = vst.msk [vmem:[#allocation4] sm:$0xf] %vm298, %v444
      %447 = vrot.lane.b32.xlu0 %v427, 98
      %v448 = vpop.permute.xlu0 %447
      %450 = vst.msk [vmem:[#allocation4 + $0x8] sm:$0xf] %vm305, %v448
      %v451 = vld [vmem:[#allocation4] sm:$0xff]
      %v452 = vld [vmem:[#allocation4 + $0x8] sm:$0xf]
      %455 = vrot.lane.b32.xlu0 %v451, 126
      %v456 = vpop.permute.xlu0 %455
      %457 = vrot.lane.b32.xlu0 %v452, 126
      %v458 = vpop.permute.xlu0 %457
      %v459 = vrot.slane %v456, 4
      %v460 = vrot.slane %v458, 4
      %v461 = vsel %vm317, %v459, %v460
      %v462 = vsel %vm319, %v456, %v461
      %v464 = vsel %vm253, %v462, %v451
      %v466 = vcombine.high %v464, %v464
      %468 = vst [vmem:[#allocation2 + $0x30] sm:$0xf] %v464
      %469 = vst [vmem:[#allocation2 + $0x38] sm:$0xf] %v466
      %v470 = vcombine.low %v426, %v426
      %v471 = vcombine.low %v427, %v427
      %472 = vrot.lane.b32.xlu0 %v470, 96
      %v473 = vpop.permute.xlu0 %472
      %474 = vrot.lane.b32.xlu0 %v471, 96
      %v475 = vpop.permute.xlu0 %474
      %vm476 = vcmask 785408
      %v477 = vsel %vm476, %v473, %v444
      %v478 = vsel %vm476, %v444, %v475
      %481 = vst [vmem:[#allocation2 + $0x30] sm:$0xf0] %v477
      %482 = vst [vmem:[#allocation2 + $0x38] sm:$0xf0] %v478
      %v483 = vld [vmem:[#allocation4] sm:$0xff]
      %v484 = vld [vmem:[#allocation4 + $0x8] sm:$0xf]
      %487 = vrot.lane.b32.xlu0 %v483, 126
      %v488 = vpop.permute.xlu0 %487
      %489 = vrot.lane.b32.xlu0 %v484, 126
      %v490 = vpop.permute.xlu0 %489
      %v491 = vrot.slane %v488, 4
      %v492 = vrot.slane %v490, 4
      %v493 = vsel %vm317, %v491, %v492
      %v494 = vsel %vm319, %v488, %v493
      %v496 = vsel %vm256, %v483, %v494
      %v498 = vcombine.high %v496, %v496
      %500 = vst [vmem:[#allocation2 + $0x40] sm:$0xf] %v496
      %501 = vst [vmem:[#allocation2 + $0x48] sm:$0xf] %v498
      %v502 = vld [vmem:[%s2] sm:$0xf]
      %v503 = vld [vmem:[#allocation2] sm:$0xff]
      %v504 = vld [vmem:[#allocation2 + $0x8] sm:$0xff]
      %v505 = vld [vmem:[#allocation2 + $0x10] sm:$0xff]
      %v506 = vld [vmem:[#allocation2 + $0x18] sm:$0xff]
      %v507 = vld [vmem:[#allocation2 + $0x20] sm:$0xff]
      %v508 = vld [vmem:[#allocation2 + $0x28] sm:$0xff]
      %v509 = vld [vmem:[#allocation2 + $0x30] sm:$0xff]
      %v510 = vld [vmem:[#allocation2 + $0x38] sm:$0xff]
      %v511 = vld [vmem:[#allocation2 + $0x40] sm:$0xf]
      %v512 = vld [vmem:[#allocation2 + $0x48] sm:$0xf]
      %vm513 = vcmask 293888
      %v515 = vsel %vm513, %v502, 0
      %v518 = vsel %vm317, %v511, 0
      %v521 = vsel %vm317, %v512, 0
      %523 = vmatprep.subr.mxu0 %v504
      %524 = vmatpush1.msra.mxu0 %v503
      %525 = vmatprep.subr.mxu0 %v506
      %526 = vmatpush1.msra.mxu0 %v505
      %527 = vmatprep.subr.mxu0 %v508
      %528 = vmatpush1.msra.mxu0 %v507
      %529 = vmatprep.subr.mxu0 %v510
      %530 = vmatpush1.msra.mxu0 %v509
      %531 = vmatprep.subr.mxu0 %v521
      %532 = vmatpush1.msra.mxu0 %v518
      %533 = vmatprep.subr.mxu0 0.0
      %534 = vmatpush1.msra.mxu0 0.0
      %535 = vmatprep.subr.mxu0 0.0
      %536 = vmatpush1.msra.mxu0 0.0
      %537 = vmatprep.subr.mxu0 0.0
      %538 = vmatpush1.msra.mxu0 0.0
      %539 = vmatprep.subr.mxu0 0.0
      %540 = vmatpush1.msra.mxu0 0.0
      %541 = vmatprep.subr.mxu0 0.0
      %542 = vmatpush1.msra.mxu0 0.0
      %543 = vmatprep.subr.mxu0 0.0
      %544 = vmatpush1.msra.mxu0 0.0
      %545 = vmatprep.subr.mxu0 0.0
      %546 = vmatpush1.msra.mxu0 0.0
      %547 = vmatprep.subr.mxu0 0.0
      %548 = vmatpush1.msra.mxu0 0.0
      %549 = vmatprep.subr.mxu0 0.0
      %550 = vmatpush1.msra.mxu0 0.0
      %551 = vmatprep.subr.mxu0 0.0
      %552 = vmatpush1.msra.mxu0 0.0
      %553 = vmatprep.subr.mxu0 0.0
      %554 = vmatpush1.msra.mxu0 0.0
      %555 = vmatprep.subr.mxu0 0.0
      %556 = vmatpush1.msra.mxu0 0.0
      %557 = vmatprep.subr.mxu0 0.0
      %558 = vmatpush1.msra.mxu0 0.0
      %559 = vmatprep.subr.mxu0 0.0
      %560 = vmatpush1.msra.mxu0 0.0
      %561 = vmatprep.subr.mxu0 0.0
      %562 = vmatpush1.msra.mxu0 0.0
      %563 = vmatprep.subr.mxu0 0.0
      %564 = vmatpush1.msra.mxu0 0.0
      %565 = vmatprep.subr.mxu0 0.0
      %566 = vmatpush1.msra.mxu0 0.0
      %567 = vmatprep.subr.mxu0 0.0
      %568 = vmatpush1.msra.mxu0 0.0
      %569 = vmatprep.subr.mxu0 0.0
      %570 = vmatpush1.msra.mxu0 0.0
      %571 = vmatprep.subr.mxu0 0.0
      %572 = vmatpush1.msra.mxu0 0.0
      %573 = vmatprep.subr.mxu0 0.0
      %574 = vmatpush1.msra.mxu0 0.0
      %575 = vmatprep.subr.mxu0 0.0
      %576 = vmatpush1.msra.mxu0 0.0
      %577 = vmatprep.subr.mxu0 0.0
      %578 = vmatpush1.msra.mxu0 0.0
      %579 = vmatprep.subr.mxu0 0.0
      %580 = vmatpush1.msra.mxu0 0.0
      %581 = vmatprep.subr.mxu0 0.0
      %582 = vmatpush1.msra.mxu0 0.0
      %583 = vmatprep.subr.mxu0 0.0
      %584 = vmatpush1.msra.mxu0 0.0
      %585 = vmatprep.subr.mxu0 0.0
      %586 = vmatpush1.msra.mxu0 0.0
      %587 = vmatprep.mubr.f32.mxu0 0.0
      %588 = vmatmul.mubr.f32.gmra.mrb[0].mxu0 %v515
      %v589 = vpop.f32.mrb[0].mxu0
      %v590 = vadd.f32 0.0, %v589
      %v591 = vpop.f32.mrb[0].mxu0
      %v592 = vadd.f32 0.0, %v591
      %593 = vdwg.mxu0
      %v594 = vsel %vm317, %v590, 0.0
      %v595 = vsel %vm317, %v592, 0.0
      %v596 = vadd.f32 %v594, %v595
      %597 = vadd.xlane.f32.xlu0 %v596
      %v598 = vpop.xlane.xlu0 %597
      %v599 = vmul.f32 %v590, %v590
      %v600 = vmul.f32 %v592, %v592
      %v601 = vsel %vm317, %v599, 0.0
      %v602 = vsel %vm317, %v600, 0.0
      %v603 = vadd.f32 %v601, %v602
      %604 = vadd.xlane.f32.xlu0 %v603
      %v605 = vpop.xlane.xlu0 %604
      %v606 = vmul.f32 %v598, 0.00390625
      %v607 = vmul.f32 %v605, 0.00390625
      %v608 = vmul.f32 %v606, %v606
      %v609 = vsub.f32 %v607, %v608
      %v610 = vmax.f32 %v609, 0.0
      %v611 = vsub.f32 %v590, %v606
      %v612 = vsub.f32 %v592, %v606
      %v613 = vadd.f32 %v610, 1e-05
      %v614 = vrsqrt.pop %v613
      %v615 = vmul.f32 %v611, %v614
      %v616 = vmul.f32 %v612, %v614
      %v617 = vmax.f32 %v615, 0.0
      %v618 = vmax.f32 %v616, 0.0
      %v621 = vcombine.low %v617, %v618
      %622 = vrot.lane.b32.xlu0 %v621, 16
      %v623 = vpop.permute.xlu0 %622
      %v624 = vrot.slane %v623, 4
      %v625 = vsel %vm265, %v624, %v623
      %628 = vst.msk [vmem:[#allocation3] sm:$0xff] %vm271, %v625
      %629 = vst.msk [vmem:[#allocation3 + $0x8] sm:$0xf] %vm273, %v624
      %630 = vrot.lane.b32.xlu0 %v617, 112
      %v631 = vpop.permute.xlu0 %630
      %633 = vst.msk [vmem:[#allocation3] sm:$0xf] %vm273, %v631
      %634 = vrot.lane.b32.xlu0 %v618, 48
      %v635 = vpop.permute.xlu0 %634
      %637 = vst.msk [vmem:[#allocation3 + $0x8] sm:$0xf] %vm284, %v635
      %v638 = vld [vmem:[#allocation3] sm:$0xff]
      %640 = vrot.lane.b32.xlu0 %v638, 1
      %v641 = vpop.permute.xlu0 %640
      %v642 = vrot.slane %v641, 4
      %v643 = vsel %vm291, %v642, %v641
      %646 = vst.msk [vmem:[#allocation4] sm:$0xff] %vm296, %v643
      %647 = vst.msk [vmem:[#allocation4 + $0x8] sm:$0xf] %vm298, %v642
      %648 = vst.msk [vmem:[#allocation4] sm:$0xf] %vm298, %v638
      %649 = vrot.lane.b32.xlu0 %v638, 2
      %v650 = vpop.permute.xlu0 %649
      %v651 = vrot.slane %v650, 4
      %653 = vst.msk [vmem:[#allocation4 + $0x8] sm:$0xf] %vm305, %v651
      %v654 = vld [vmem:[#allocation4] sm:$0xff]
      %v655 = vld [vmem:[#allocation4 + $0x8] sm:$0xf]
      %658 = vrot.lane.b32.xlu0 %v654, 126
      %v659 = vpop.permute.xlu0 %658
      %660 = vrot.lane.b32.xlu0 %v655, 126
      %v661 = vpop.permute.xlu0 %660
      %v662 = vrot.slane %v659, 4
      %v663 = vrot.slane %v661, 4
      %v664 = vsel %vm317, %v662, %v663
      %v665 = vsel %vm319, %v659, %v664
      %v667 = vsel %vm253, %v665, %v654
      %v669 = vcombine.high %v667, %v667
      %671 = vst [vmem:[#allocation2] sm:$0xf] %v667
      %672 = vst [vmem:[#allocation2 + $0x8] sm:$0xf] %v669
      %v673 = vcombine.low %v638, %v638
      %675 = vst [vmem:[#allocation2] sm:$0xf0] %v673
      %676 = vst [vmem:[#allocation2 + $0x8] sm:$0xf0] %v638
      %v677 = vld [vmem:[#allocation4] sm:$0xff]
      %v678 = vld [vmem:[#allocation4 + $0x8] sm:$0xf]
      %681 = vrot.lane.b32.xlu0 %v677, 126
      %v682 = vpop.permute.xlu0 %681
      %683 = vrot.lane.b32.xlu0 %v678, 126
      %v684 = vpop.permute.xlu0 %683
      %v685 = vrot.slane %v682, 4
      %v686 = vrot.slane %v684, 4
      %v687 = vsel %vm317, %v685, %v686
      %v688 = vsel %vm319, %v682, %v687
      %v690 = vsel %vm256, %v677, %v688
      %v692 = vcombine.high %v690, %v690
      %694 = vst [vmem:[#allocation2 + $0x10] sm:$0xf] %v690
      %695 = vst [vmem:[#allocation2 + $0x18] sm:$0xf] %v692
      %v696 = vld [vmem:[#allocation3] sm:$0xff]
      %v697 = vld [vmem:[#allocation3 + $0x8] sm:$0xf]
      %700 = vrot.lane.b32.xlu0 %v696, 113
      %v701 = vpop.permute.xlu0 %700
      %702 = vrot.lane.b32.xlu0 %v697, 113
      %v703 = vpop.permute.xlu0 %702
      %v704 = vrot.slane %v701, 4
      %v705 = vrot.slane %v703, 4
      %v706 = vsel %vm317, %v704, %v705
      %v707 = vsel %vm362, %v701, %v706
      %710 = vst.msk [vmem:[#allocation4] sm:$0xff] %vm296, %v707
      %711 = vst.msk [vmem:[#allocation4 + $0x8] sm:$0xf] %vm298, %v703
      %712 = vrot.lane.b32.xlu0 %v696, 112
      %v713 = vpop.permute.xlu0 %712
      %715 = vst.msk [vmem:[#allocation4] sm:$0xf] %vm298, %v713
      %716 = vrot.lane.b32.xlu0 %v697, 114
      %v717 = vpop.permute.xlu0 %716
      %719 = vst.msk [vmem:[#allocation4 + $0x8] sm:$0xf] %vm305, %v717
      %v720 = vld [vmem:[#allocation4] sm:$0xff]
      %v721 = vld [vmem:[#allocation4 + $0x8] sm:$0xf]
      %724 = vrot.lane.b32.xlu0 %v720, 126
      %v725 = vpop.permute.xlu0 %724
      %726 = vrot.lane.b32.xlu0 %v721, 126
      %v727 = vpop.permute.xlu0 %726
      %v728 = vrot.slane %v725, 4
      %v729 = vrot.slane %v727, 4
      %v730 = vsel %vm317, %v728, %v729
      %v731 = vsel %vm319, %v725, %v730
      %v733 = vsel %vm253, %v731, %v720
      %v735 = vcombine.low %v733, %v733
      %737 = vst [vmem:[#allocation2 + $0x10] sm:$0xf0] %v735
      %738 = vst [vmem:[#allocation2 + $0x18] sm:$0xf0] %v733
      %v739 = vcombine.high %v696, %v696
      %740 = vrot.lane.b32.xlu0 %v739, 112
      %v741 = vpop.permute.xlu0 %740
      %742 = vrot.lane.b32.xlu0 %v697, 112
      %v743 = vpop.permute.xlu0 %742
      %v744 = vsel %vm400, %v713, %v741
      %v745 = vsel %vm400, %v741, %v743
      %748 = vst [vmem:[#allocation2 + $0x20] sm:$0xf] %v744
      %749 = vst [vmem:[#allocation2 + $0x28] sm:$0xf] %v745
      %v750 = vld [vmem:[#allocation4] sm:$0xff]
      %v751 = vld [vmem:[#allocation4 + $0x8] sm:$0xf]
      %754 = vrot.lane.b32.xlu0 %v750, 126
      %v755 = vpop.permute.xlu0 %754
      %756 = vrot.lane.b32.xlu0 %v751, 126
      %v757 = vpop.permute.xlu0 %756
      %v758 = vrot.slane %v755, 4
      %v759 = vrot.slane %v757, 4
      %v760 = vsel %vm317, %v758, %v759
      %v761 = vsel %vm319, %v755, %v760
      %v763 = vsel %vm256, %v750, %v761
      %v765 = vcombine.low %v763, %v763
      %767 = vst [vmem:[#allocation2 + $0x20] sm:$0xf0] %v765
      %768 = vst [vmem:[#allocation2 + $0x28] sm:$0xf0] %v763
      %v769 = vld [vmem:[#allocation3] sm:$0xff]
      %v770 = vld [vmem:[#allocation3 + $0x8] sm:$0xf]
      %773 = vrot.lane.b32.xlu0 %v769, 97
      %v774 = vpop.permute.xlu0 %773
      %775 = vrot.lane.b32.xlu0 %v770, 97
      %v776 = vpop.permute.xlu0 %775
      %v777 = vrot.slane %v774, 4
      %v778 = vrot.slane %v776, 4
      %v779 = vsel %vm317, %v777, %v778
      %v780 = vsel %vm437, %v774, %v779
      %783 = vst.msk [vmem:[#allocation4] sm:$0xff] %vm296, %v780
      %784 = vst.msk [vmem:[#allocation4 + $0x8] sm:$0xf] %vm298, %v776
      %785 = vrot.lane.b32.xlu0 %v769, 96
      %v786 = vpop.permute.xlu0 %785
      %788 = vst.msk [vmem:[#allocation4] sm:$0xf] %vm298, %v786
      %789 = vrot.lane.b32.xlu0 %v770, 98
      %v790 = vpop.permute.xlu0 %789
      %792 = vst.msk [vmem:[#allocation4 + $0x8] sm:$0xf] %vm305, %v790
      %v793 = vld [vmem:[#allocation4] sm:$0xff]
      %v794 = vld [vmem:[#allocation4 + $0x8] sm:$0xf]
      %797 = vrot.lane.b32.xlu0 %v793, 126
      %v798 = vpop.permute.xlu0 %797
      %799 = vrot.lane.b32.xlu0 %v794, 126
      %v800 = vpop.permute.xlu0 %799
      %v801 = vrot.slane %v798, 4
      %v802 = vrot.slane %v800, 4
      %v803 = vsel %vm317, %v801, %v802
      %v804 = vsel %vm319, %v798, %v803
      %v806 = vsel %vm253, %v804, %v793
      %v808 = vcombine.high %v806, %v806
      %810 = vst [vmem:[#allocation2 + $0x30] sm:$0xf] %v806
      %811 = vst [vmem:[#allocation2 + $0x38] sm:$0xf] %v808
      %v812 = vcombine.low %v769, %v769
      %v813 = vcombine.low %v770, %v770
      %814 = vrot.lane.b32.xlu0 %v812, 96
      %v815 = vpop.permute.xlu0 %814
      %816 = vrot.lane.b32.xlu0 %v813, 96
      %v817 = vpop.permute.xlu0 %816
      %v818 = vsel %vm476, %v815, %v786
      %v819 = vsel %vm476, %v786, %v817
      %822 = vst [vmem:[#allocation2 + $0x30] sm:$0xf0] %v818
      %823 = vst [vmem:[#allocation2 + $0x38] sm:$0xf0] %v819
      %v824 = vld [vmem:[#allocation4] sm:$0xff]
      %v825 = vld [vmem:[#allocation4 + $0x8] sm:$0xf]
      %828 = vrot.lane.b32.xlu0 %v824, 126
      %v829 = vpop.permute.xlu0 %828
      %830 = vrot.lane.b32.xlu0 %v825, 126
      %v831 = vpop.permute.xlu0 %830
      %v832 = vrot.slane %v829, 4
      %v833 = vrot.slane %v831, 4
      %v834 = vsel %vm317, %v832, %v833
      %v835 = vsel %vm319, %v829, %v834
      %v837 = vsel %vm256, %v824, %v835
      %v839 = vcombine.high %v837, %v837
      %841 = vst [vmem:[#allocation2 + $0x40] sm:$0xf] %v837
      %842 = vst [vmem:[#allocation2 + $0x48] sm:$0xf] %v839
      %v843 = vld [vmem:[%s3] sm:$0xf]
      %v844 = vld [vmem:[#allocation2] sm:$0xff]
      %v845 = vld [vmem:[#allocation2 + $0x8] sm:$0xff]
      %v846 = vld [vmem:[#allocation2 + $0x10] sm:$0xff]
      %v847 = vld [vmem:[#allocation2 + $0x18] sm:$0xff]
      %v848 = vld [vmem:[#allocation2 + $0x20] sm:$0xff]
      %v849 = vld [vmem:[#allocation2 + $0x28] sm:$0xff]
      %v850 = vld [vmem:[#allocation2 + $0x30] sm:$0xff]
      %v851 = vld [vmem:[#allocation2 + $0x38] sm:$0xff]
      %v852 = vld [vmem:[#allocation2 + $0x40] sm:$0xf]
      %v853 = vld [vmem:[#allocation2 + $0x48] sm:$0xf]
      %v855 = vsel %vm513, %v843, 0
      %v858 = vsel %vm317, %v852, 0
      %v861 = vsel %vm317, %v853, 0
      %863 = vmatprep.subr.mxu0 %v845
      %864 = vmatpush1.msra.mxu0 %v844
      %865 = vmatprep.subr.mxu0 %v847
      %866 = vmatpush1.msra.mxu0 %v846
      %867 = vmatprep.subr.mxu0 %v849
      %868 = vmatpush1.msra.mxu0 %v848
      %869 = vmatprep.subr.mxu0 %v851
      %870 = vmatpush1.msra.mxu0 %v850
      %871 = vmatprep.subr.mxu0 %v861
      %872 = vmatpush1.msra.mxu0 %v858
      %873 = vmatprep.subr.mxu0 0.0
      %874 = vmatpush1.msra.mxu0 0.0
      %875 = vmatprep.subr.mxu0 0.0
      %876 = vmatpush1.msra.mxu0 0.0
      %877 = vmatprep.subr.mxu0 0.0
      %878 = vmatpush1.msra.mxu0 0.0
      %879 = vmatprep.subr.mxu0 0.0
      %880 = vmatpush1.msra.mxu0 0.0
      %881 = vmatprep.subr.mxu0 0.0
      %882 = vmatpush1.msra.mxu0 0.0
      %883 = vmatprep.subr.mxu0 0.0
      %884 = vmatpush1.msra.mxu0 0.0
      %885 = vmatprep.subr.mxu0 0.0
      %886 = vmatpush1.msra.mxu0 0.0
      %887 = vmatprep.subr.mxu0 0.0
      %888 = vmatpush1.msra.mxu0 0.0
      %889 = vmatprep.subr.mxu0 0.0
      %890 = vmatpush1.msra.mxu0 0.0
      %891 = vmatprep.subr.mxu0 0.0
      %892 = vmatpush1.msra.mxu0 0.0
      %893 = vmatprep.subr.mxu0 0.0
      %894 = vmatpush1.msra.mxu0 0.0
      %895 = vmatprep.subr.mxu0 0.0
      %896 = vmatpush1.msra.mxu0 0.0
      %897 = vmatprep.subr.mxu0 0.0
      %898 = vmatpush1.msra.mxu0 0.0
      %899 = vmatprep.subr.mxu0 0.0
      %900 = vmatpush1.msra.mxu0 0.0
      %901 = vmatprep.subr.mxu0 0.0
      %902 = vmatpush1.msra.mxu0 0.0
      %903 = vmatprep.subr.mxu0 0.0
      %904 = vmatpush1.msra.mxu0 0.0
      %905 = vmatprep.subr.mxu0 0.0
      %906 = vmatpush1.msra.mxu0 0.0
      %907 = vmatprep.subr.mxu0 0.0
      %908 = vmatpush1.msra.mxu0 0.0
      %909 = vmatprep.subr.mxu0 0.0
      %910 = vmatpush1.msra.mxu0 0.0
      %911 = vmatprep.subr.mxu0 0.0
      %912 = vmatpush1.msra.mxu0 0.0
      %913 = vmatprep.subr.mxu0 0.0
      %914 = vmatpush1.msra.mxu0 0.0
      %915 = vmatprep.subr.mxu0 0.0
      %916 = vmatpush1.msra.mxu0 0.0
      %917 = vmatprep.subr.mxu0 0.0
      %918 = vmatpush1.msra.mxu0 0.0
      %919 = vmatprep.subr.mxu0 0.0
      %920 = vmatpush1.msra.mxu0 0.0
      %921 = vmatprep.subr.mxu0 0.0
      %922 = vmatpush1.msra.mxu0 0.0
      %923 = vmatprep.subr.mxu0 0.0
      %924 = vmatpush1.msra.mxu0 0.0
      %925 = vmatprep.subr.mxu0 0.0
      %926 = vmatpush1.msra.mxu0 0.0
      %927 = vmatprep.mubr.f32.mxu0 0.0
      %928 = vmatmul.mubr.f32.gmra.mrb[0].mxu0 %v855
      %v929 = vpop.f32.mrb[0].mxu0
      %v930 = vadd.f32 0.0, %v929
      %v931 = vpop.f32.mrb[0].mxu0
      %v932 = vadd.f32 0.0, %v931
      %933 = vdwg.mxu0
      %v934 = vsel %vm317, %v930, 0.0
      %v935 = vsel %vm317, %v932, 0.0
      %v936 = vadd.f32 %v934, %v935
      %937 = vadd.xlane.f32.xlu0 %v936
      %v938 = vpop.xlane.xlu0 %937
      %v939 = vmul.f32 %v930, %v930
      %v940 = vmul.f32 %v932, %v932
      %v941 = vsel %vm317, %v939, 0.0
      %v942 = vsel %vm317, %v940, 0.0
      %v943 = vadd.f32 %v941, %v942
      %944 = vadd.xlane.f32.xlu0 %v943
      %v945 = vpop.xlane.xlu0 %944
      %v946 = vmul.f32 %v938, 0.00390625
      %v947 = vmul.f32 %v945, 0.00390625
      %v948 = vmul.f32 %v946, %v946
      %v949 = vsub.f32 %v947, %v948
      %v950 = vmax.f32 %v949, 0.0
      %v951 = vsub.f32 %v930, %v946
      %v952 = vsub.f32 %v932, %v946
      %v953 = vadd.f32 %v950, 1e-05
      %v954 = vrsqrt.pop %v953
      %v955 = vmul.f32 %v951, %v954
      %v956 = vmul.f32 %v952, %v954
      %v957 = vadd.f32 %v257, %v955
      %v958 = vadd.f32 %v258, %v956
      %v961 = vcombine.low %v957, %v958
      %962 = vrot.lane.b32.xlu0 %v961, 16
      %v963 = vpop.permute.xlu0 %962
      %v964 = vrot.slane %v963, 4
      %v965 = vsel %vm265, %v964, %v963
      %968 = vst.msk [vmem:[#allocation3] sm:$0xff] %vm271, %v965
      %969 = vst.msk [vmem:[#allocation3 + $0x8] sm:$0xf] %vm273, %v964
      %970 = vrot.lane.b32.xlu0 %v957, 112
      %v971 = vpop.permute.xlu0 %970
      %973 = vst.msk [vmem:[#allocation3] sm:$0xf] %vm273, %v971
      %974 = vrot.lane.b32.xlu0 %v958, 48
      %v975 = vpop.permute.xlu0 %974
      %977 = vst.msk [vmem:[#allocation3 + $0x8] sm:$0xf] %vm284, %v975
      %v978 = vld [vmem:[#allocation3] sm:$0xff]
      %980 = vrot.lane.b32.xlu0 %v978, 1
      %v981 = vpop.permute.xlu0 %980
      %v982 = vrot.slane %v981, 4
      %v983 = vsel %vm291, %v982, %v981
      %986 = vst.msk [vmem:[#allocation4] sm:$0xff] %vm296, %v983
      %987 = vst.msk [vmem:[#allocation4 + $0x8] sm:$0xf] %vm298, %v982
      %988 = vst.msk [vmem:[#allocation4] sm:$0xf] %vm298, %v978
      %989 = vrot.lane.b32.xlu0 %v978, 2
      %v990 = vpop.permute.xlu0 %989
      %v991 = vrot.slane %v990, 4
      %993 = vst.msk [vmem:[#allocation4 + $0x8] sm:$0xf] %vm305, %v991
      %v994 = vld [vmem:[#allocation4] sm:$0xff]
      %v995 = vld [vmem:[#allocation4 + $0x8] sm:$0xf]
      %998 = vrot.lane.b32.xlu0 %v994, 126
      %v999 = vpop.permute.xlu0 %998
      %1000 = vrot.lane.b32.xlu0 %v995, 126
      %v1001 = vpop.permute.xlu0 %1000
      %v1002 = vrot.slane %v999, 4
      %v1003 = vrot.slane %v1001, 4
      %v1004 = vsel %vm317, %v1002, %v1003
      %v1005 = vsel %vm319, %v999, %v1004
      %v1007 = vsel %vm253, %v1005, %v994
      %v1009 = vcombine.high %v1007, %v1007
      %1011 = vst [vmem:[#allocation2] sm:$0xf] %v1007
      %1012 = vst [vmem:[#allocation2 + $0x8] sm:$0xf] %v1009
      %v1013 = vcombine.low %v978, %v978
      %1015 = vst [vmem:[#allocation2] sm:$0xf0] %v1013
      %1016 = vst [vmem:[#allocation2 + $0x8] sm:$0xf0] %v978
      %v1017 = vld [vmem:[#allocation4] sm:$0xff]
      %v1018 = vld [vmem:[#allocation4 + $0x8] sm:$0xf]
      %1021 = vrot.lane.b32.xlu0 %v1017, 126
      %v1022 = vpop.permute.xlu0 %1021
      %1023 = vrot.lane.b32.xlu0 %v1018, 126
      %v1024 = vpop.permute.xlu0 %1023
      %v1025 = vrot.slane %v1022, 4
      %v1026 = vrot.slane %v1024, 4
      %v1027 = vsel %vm317, %v1025, %v1026
      %v1028 = vsel %vm319, %v1022, %v1027
      %v1030 = vsel %vm256, %v1017, %v1028
      %v1032 = vcombine.high %v1030, %v1030
      %1034 = vst [vmem:[#allocation2 + $0x10] sm:$0xf] %v1030
      %1035 = vst [vmem:[#allocation2 + $0x18] sm:$0xf] %v1032
      %v1036 = vld [vmem:[#allocation3] sm:$0xff]
      %v1037 = vld [vmem:[#allocation3 + $0x8] sm:$0xf]
      %1040 = vrot.lane.b32.xlu0 %v1036, 113
      %v1041 = vpop.permute.xlu0 %1040
      %1042 = vrot.lane.b32.xlu0 %v1037, 113
      %v1043 = vpop.permute.xlu0 %1042
      %v1044 = vrot.slane %v1041, 4
      %v1045 = vrot.slane %v1043, 4
      %v1046 = vsel %vm317, %v1044, %v1045
      %v1047 = vsel %vm362, %v1041, %v1046
      %1050 = vst.msk [vmem:[#allocation4] sm:$0xff] %vm296, %v1047
      %1051 = vst.msk [vmem:[#allocation4 + $0x8] sm:$0xf] %vm298, %v1043
      %1052 = vrot.lane.b32.xlu0 %v1036, 112
      %v1053 = vpop.permute.xlu0 %1052
      %1055 = vst.msk [vmem:[#allocation4] sm:$0xf] %vm298, %v1053
      %1056 = vrot.lane.b32.xlu0 %v1037, 114
      %v1057 = vpop.permute.xlu0 %1056
      %1059 = vst.msk [vmem:[#allocation4 + $0x8] sm:$0xf] %vm305, %v1057
      %v1060 = vld [vmem:[#allocation4] sm:$0xff]
      %v1061 = vld [vmem:[#allocation4 + $0x8] sm:$0xf]
      %1064 = vrot.lane.b32.xlu0 %v1060, 126
      %v1065 = vpop.permute.xlu0 %1064
      %1066 = vrot.lane.b32.xlu0 %v1061, 126
      %v1067 = vpop.permute.xlu0 %1066
      %v1068 = vrot.slane %v1065, 4
      %v1069 = vrot.slane %v1067, 4
      %v1070 = vsel %vm317, %v1068, %v1069
      %v1071 = vsel %vm319, %v1065, %v1070
      %v1073 = vsel %vm253, %v1071, %v1060
      %v1075 = vcombine.low %v1073, %v1073
      %1077 = vst [vmem:[#allocation2 + $0x10] sm:$0xf0] %v1075
      %1078 = vst [vmem:[#allocation2 + $0x18] sm:$0xf0] %v1073
      %v1079 = vcombine.high %v1036, %v1036
      %1080 = vrot.lane.b32.xlu0 %v1079, 112
      %v1081 = vpop.permute.xlu0 %1080
      %1082 = vrot.lane.b32.xlu0 %v1037, 112
      %v1083 = vpop.permute.xlu0 %1082
      %v1084 = vsel %vm400, %v1053, %v1081
      %v1085 = vsel %vm400, %v1081, %v1083
      %1088 = vst [vmem:[#allocation2 + $0x20] sm:$0xf] %v1084
      %1089 = vst [vmem:[#allocation2 + $0x28] sm:$0xf] %v1085
      %v1090 = vld [vmem:[#allocation4] sm:$0xff]
      %v1091 = vld [vmem:[#allocation4 + $0x8] sm:$0xf]
      %1094 = vrot.lane.b32.xlu0 %v1090, 126
      %v1095 = vpop.permute.xlu0 %1094
      %1096 = vrot.lane.b32.xlu0 %v1091, 126
      %v1097 = vpop.permute.xlu0 %1096
      %v1098 = vrot.slane %v1095, 4
      %v1099 = vrot.slane %v1097, 4
      %v1100 = vsel %vm317, %v1098, %v1099
      %v1101 = vsel %vm319, %v1095, %v1100
      %v1103 = vsel %vm256, %v1090, %v1101
      %v1105 = vcombine.low %v1103, %v1103
      %1107 = vst [vmem:[#allocation2 + $0x20] sm:$0xf0] %v1105
      %1108 = vst [vmem:[#allocation2 + $0x28] sm:$0xf0] %v1103
      %v1109 = vld [vmem:[#allocation3] sm:$0xff]
      %v1110 = vld [vmem:[#allocation3 + $0x8] sm:$0xf]
      %1113 = vrot.lane.b32.xlu0 %v1109, 97
      %v1114 = vpop.permute.xlu0 %1113
      %1115 = vrot.lane.b32.xlu0 %v1110, 97
      %v1116 = vpop.permute.xlu0 %1115
      %v1117 = vrot.slane %v1114, 4
      %v1118 = vrot.slane %v1116, 4
      %v1119 = vsel %vm317, %v1117, %v1118
      %v1120 = vsel %vm437, %v1114, %v1119
      %1123 = vst.msk [vmem:[#allocation4] sm:$0xff] %vm296, %v1120
      %1124 = vst.msk [vmem:[#allocation4 + $0x8] sm:$0xf] %vm298, %v1116
      %1125 = vrot.lane.b32.xlu0 %v1109, 96
      %v1126 = vpop.permute.xlu0 %1125
      %1128 = vst.msk [vmem:[#allocation4] sm:$0xf] %vm298, %v1126
      %1129 = vrot.lane.b32.xlu0 %v1110, 98
      %v1130 = vpop.permute.xlu0 %1129
      %1132 = vst.msk [vmem:[#allocation4 + $0x8] sm:$0xf] %vm305, %v1130
      %v1133 = vld [vmem:[#allocation4] sm:$0xff]
      %v1134 = vld [vmem:[#allocation4 + $0x8] sm:$0xf]
      %1137 = vrot.lane.b32.xlu0 %v1133, 126
      %v1138 = vpop.permute.xlu0 %1137
      %1139 = vrot.lane.b32.xlu0 %v1134, 126
      %v1140 = vpop.permute.xlu0 %1139
      %v1141 = vrot.slane %v1138, 4
      %v1142 = vrot.slane %v1140, 4
      %v1143 = vsel %vm317, %v1141, %v1142
      %v1144 = vsel %vm319, %v1138, %v1143
      %v1146 = vsel %vm253, %v1144, %v1133
      %v1148 = vcombine.high %v1146, %v1146
      %1150 = vst [vmem:[#allocation2 + $0x30] sm:$0xf] %v1146
      %1151 = vst [vmem:[#allocation2 + $0x38] sm:$0xf] %v1148
      %v1152 = vcombine.low %v1109, %v1109
      %v1153 = vcombine.low %v1110, %v1110
      %1154 = vrot.lane.b32.xlu0 %v1152, 96
      %v1155 = vpop.permute.xlu0 %1154
      %1156 = vrot.lane.b32.xlu0 %v1153, 96
      %v1157 = vpop.permute.xlu0 %1156
      %v1158 = vsel %vm476, %v1155, %v1126
      %v1159 = vsel %vm476, %v1126, %v1157
      %1162 = vst [vmem:[#allocation2 + $0x30] sm:$0xf0] %v1158
      %1163 = vst [vmem:[#allocation2 + $0x38] sm:$0xf0] %v1159
      %v1164 = vld [vmem:[#allocation4] sm:$0xff]
      %v1165 = vld [vmem:[#allocation4 + $0x8] sm:$0xf]
      %1168 = vrot.lane.b32.xlu0 %v1164, 126
      %v1169 = vpop.permute.xlu0 %1168
      %1170 = vrot.lane.b32.xlu0 %v1165, 126
      %v1171 = vpop.permute.xlu0 %1170
      %v1172 = vrot.slane %v1169, 4
      %v1173 = vrot.slane %v1171, 4
      %v1174 = vsel %vm317, %v1172, %v1173
      %v1175 = vsel %vm319, %v1169, %v1174
      %v1177 = vsel %vm256, %v1164, %v1175
      %v1179 = vcombine.high %v1177, %v1177
      %1181 = vst [vmem:[#allocation2 + $0x40] sm:$0xf] %v1177
      %1182 = vst [vmem:[#allocation2 + $0x48] sm:$0xf] %v1179
      %v1183 = vld [vmem:[%s4] sm:$0xf]
      %v1184 = vld [vmem:[#allocation2] sm:$0xff]
      %v1185 = vld [vmem:[#allocation2 + $0x8] sm:$0xff]
      %v1186 = vld [vmem:[#allocation2 + $0x10] sm:$0xff]
      %v1187 = vld [vmem:[#allocation2 + $0x18] sm:$0xff]
      %v1188 = vld [vmem:[#allocation2 + $0x20] sm:$0xff]
      %v1189 = vld [vmem:[#allocation2 + $0x28] sm:$0xff]
      %v1190 = vld [vmem:[#allocation2 + $0x30] sm:$0xff]
      %v1191 = vld [vmem:[#allocation2 + $0x38] sm:$0xff]
      %v1192 = vld [vmem:[#allocation2 + $0x40] sm:$0xf]
      %v1193 = vld [vmem:[#allocation2 + $0x48] sm:$0xf]
      %v1195 = vsel %vm513, %v1183, 0
      %v1198 = vsel %vm317, %v1192, 0
      %v1201 = vsel %vm317, %v1193, 0
      %1203 = vmatprep.subr.mxu0 %v1185
      %1204 = vmatpush1.msra.mxu0 %v1184
      %1205 = vmatprep.subr.mxu0 %v1187
      %1206 = vmatpush1.msra.mxu0 %v1186
      %1207 = vmatprep.subr.mxu0 %v1189
      %1208 = vmatpush1.msra.mxu0 %v1188
      %1209 = vmatprep.subr.mxu0 %v1191
      %1210 = vmatpush1.msra.mxu0 %v1190
      %1211 = vmatprep.subr.mxu0 %v1201
      %1212 = vmatpush1.msra.mxu0 %v1198
      %1213 = vmatprep.subr.mxu0 0.0
      %1214 = vmatpush1.msra.mxu0 0.0
      %1215 = vmatprep.subr.mxu0 0.0
      %1216 = vmatpush1.msra.mxu0 0.0
      %1217 = vmatprep.subr.mxu0 0.0
      %1218 = vmatpush1.msra.mxu0 0.0
      %1219 = vmatprep.subr.mxu0 0.0
      %1220 = vmatpush1.msra.mxu0 0.0
      %1221 = vmatprep.subr.mxu0 0.0
      %1222 = vmatpush1.msra.mxu0 0.0
      %1223 = vmatprep.subr.mxu0 0.0
      %1224 = vmatpush1.msra.mxu0 0.0
      %1225 = vmatprep.subr.mxu0 0.0
      %1226 = vmatpush1.msra.mxu0 0.0
      %1227 = vmatprep.subr.mxu0 0.0
      %1228 = vmatpush1.msra.mxu0 0.0
      %1229 = vmatprep.subr.mxu0 0.0
      %1230 = vmatpush1.msra.mxu0 0.0
      %1231 = vmatprep.subr.mxu0 0.0
      %1232 = vmatpush1.msra.mxu0 0.0
      %1233 = vmatprep.subr.mxu0 0.0
      %1234 = vmatpush1.msra.mxu0 0.0
      %1235 = vmatprep.subr.mxu0 0.0
      %1236 = vmatpush1.msra.mxu0 0.0
      %1237 = vmatprep.subr.mxu0 0.0
      %1238 = vmatpush1.msra.mxu0 0.0
      %1239 = vmatprep.subr.mxu0 0.0
      %1240 = vmatpush1.msra.mxu0 0.0
      %1241 = vmatprep.subr.mxu0 0.0
      %1242 = vmatpush1.msra.mxu0 0.0
      %1243 = vmatprep.subr.mxu0 0.0
      %1244 = vmatpush1.msra.mxu0 0.0
      %1245 = vmatprep.subr.mxu0 0.0
      %1246 = vmatpush1.msra.mxu0 0.0
      %1247 = vmatprep.subr.mxu0 0.0
      %1248 = vmatpush1.msra.mxu0 0.0
      %1249 = vmatprep.subr.mxu0 0.0
      %1250 = vmatpush1.msra.mxu0 0.0
      %1251 = vmatprep.subr.mxu0 0.0
      %1252 = vmatpush1.msra.mxu0 0.0
      %1253 = vmatprep.subr.mxu0 0.0
      %1254 = vmatpush1.msra.mxu0 0.0
      %1255 = vmatprep.subr.mxu0 0.0
      %1256 = vmatpush1.msra.mxu0 0.0
      %1257 = vmatprep.subr.mxu0 0.0
      %1258 = vmatpush1.msra.mxu0 0.0
      %1259 = vmatprep.subr.mxu0 0.0
      %1260 = vmatpush1.msra.mxu0 0.0
      %1261 = vmatprep.subr.mxu0 0.0
      %1262 = vmatpush1.msra.mxu0 0.0
      %1263 = vmatprep.subr.mxu0 0.0
      %1264 = vmatpush1.msra.mxu0 0.0
      %1265 = vmatprep.subr.mxu0 0.0
      %1266 = vmatpush1.msra.mxu0 0.0
      %1267 = vmatprep.mubr.f32.mxu0 0.0
      %1268 = vmatmul.mubr.f32.gmra.mrb[0].mxu0 %v1195
      %v1269 = vpop.f32.mrb[0].mxu0
      %v1270 = vadd.f32 0.0, %v1269
      %v1271 = vpop.f32.mrb[0].mxu0
      %v1272 = vadd.f32 0.0, %v1271
      %1273 = vdwg.mxu0
      %v1274 = vsel %vm317, %v1270, 0.0
      %v1275 = vsel %vm317, %v1272, 0.0
      %v1276 = vadd.f32 %v1274, %v1275
      %1277 = vadd.xlane.f32.xlu0 %v1276
      %v1278 = vpop.xlane.xlu0 %1277
      %v1279 = vmul.f32 %v1270, %v1270
      %v1280 = vmul.f32 %v1272, %v1272
      %v1281 = vsel %vm317, %v1279, 0.0
      %v1282 = vsel %vm317, %v1280, 0.0
      %v1283 = vadd.f32 %v1281, %v1282
      %1284 = vadd.xlane.f32.xlu0 %v1283
      %v1285 = vpop.xlane.xlu0 %1284
      %v1286 = vmul.f32 %v1278, 0.00390625
      %v1287 = vmul.f32 %v1285, 0.00390625
      %v1288 = vmul.f32 %v1286, %v1286
      %v1289 = vsub.f32 %v1287, %v1288
      %v1290 = vmax.f32 %v1289, 0.0
      %v1291 = vsub.f32 %v1270, %v1286
      %v1292 = vsub.f32 %v1272, %v1286
      %v1293 = vadd.f32 %v1290, 1e-05
      %v1294 = vrsqrt.pop %v1293
      %v1295 = vmul.f32 %v1291, %v1294
      %v1296 = vmul.f32 %v1292, %v1294
      %v1297 = vmax.f32 %v1295, 0.0
      %v1298 = vmax.f32 %v1296, 0.0
      %v1301 = vcombine.low %v1297, %v1298
      %1302 = vrot.lane.b32.xlu0 %v1301, 16
      %v1303 = vpop.permute.xlu0 %1302
      %v1304 = vrot.slane %v1303, 4
      %v1305 = vsel %vm265, %v1304, %v1303
      %1308 = vst.msk [vmem:[#allocation3] sm:$0xff] %vm271, %v1305
      %1309 = vst.msk [vmem:[#allocation3 + $0x8] sm:$0xf] %vm273, %v1304
      %1310 = vrot.lane.b32.xlu0 %v1297, 112
      %v1311 = vpop.permute.xlu0 %1310
      %1313 = vst.msk [vmem:[#allocation3] sm:$0xf] %vm273, %v1311
      %1314 = vrot.lane.b32.xlu0 %v1298, 48
      %v1315 = vpop.permute.xlu0 %1314
      %1317 = vst.msk [vmem:[#allocation3 + $0x8] sm:$0xf] %vm284, %v1315
      %v1318 = vld [vmem:[#allocation3] sm:$0xff]
      %1320 = vrot.lane.b32.xlu0 %v1318, 1
      %v1321 = vpop.permute.xlu0 %1320
      %v1322 = vrot.slane %v1321, 4
      %v1323 = vsel %vm291, %v1322, %v1321
      %1326 = vst.msk [vmem:[#allocation4] sm:$0xff] %vm296, %v1323
      %1327 = vst.msk [vmem:[#allocation4 + $0x8] sm:$0xf] %vm298, %v1322
      %1328 = vst.msk [vmem:[#allocation4] sm:$0xf] %vm298, %v1318
      %1329 = vrot.lane.b32.xlu0 %v1318, 2
      %v1330 = vpop.permute.xlu0 %1329
      %v1331 = vrot.slane %v1330, 4
      %1333 = vst.msk [vmem:[#allocation4 + $0x8] sm:$0xf] %vm305, %v1331
      %v1334 = vld [vmem:[#allocation4] sm:$0xff]
      %v1335 = vld [vmem:[#allocation4 + $0x8] sm:$0xf]
      %1338 = vrot.lane.b32.xlu0 %v1334, 126
      %v1339 = vpop.permute.xlu0 %1338
      %1340 = vrot.lane.b32.xlu0 %v1335, 126
      %v1341 = vpop.permute.xlu0 %1340
      %v1342 = vrot.slane %v1339, 4
      %v1343 = vrot.slane %v1341, 4
      %v1344 = vsel %vm317, %v1342, %v1343
      %v1345 = vsel %vm319, %v1339, %v1344
      %v1347 = vsel %vm253, %v1345, %v1334
      %v1349 = vcombine.high %v1347, %v1347
      %1351 = vst [vmem:[#allocation2] sm:$0xf] %v1347
      %1352 = vst [vmem:[#allocation2 + $0x8] sm:$0xf] %v1349
      %v1353 = vcombine.low %v1318, %v1318
      %1355 = vst [vmem:[#allocation2] sm:$0xf0] %v1353
      %1356 = vst [vmem:[#allocation2 + $0x8] sm:$0xf0] %v1318
      %v1357 = vld [vmem:[#allocation4] sm:$0xff]
      %v1358 = vld [vmem:[#allocation4 + $0x8] sm:$0xf]
      %1361 = vrot.lane.b32.xlu0 %v1357, 126
      %v1362 = vpop.permute.xlu0 %1361
      %1363 = vrot.lane.b32.xlu0 %v1358, 126
      %v1364 = vpop.permute.xlu0 %1363
      %v1365 = vrot.slane %v1362, 4
      %v1366 = vrot.slane %v1364, 4
      %v1367 = vsel %vm317, %v1365, %v1366
      %v1368 = vsel %vm319, %v1362, %v1367
      %v1370 = vsel %vm256, %v1357, %v1368
      %v1372 = vcombine.high %v1370, %v1370
      %1374 = vst [vmem:[#allocation2 + $0x10] sm:$0xf] %v1370
      %1375 = vst [vmem:[#allocation2 + $0x18] sm:$0xf] %v1372
      %v1376 = vld [vmem:[#allocation3] sm:$0xff]
      %v1377 = vld [vmem:[#allocation3 + $0x8] sm:$0xf]
      %1380 = vrot.lane.b32.xlu0 %v1376, 113
      %v1381 = vpop.permute.xlu0 %1380
      %1382 = vrot.lane.b32.xlu0 %v1377, 113
      %v1383 = vpop.permute.xlu0 %1382
      %v1384 = vrot.slane %v1381, 4
      %v1385 = vrot.slane %v1383, 4
      %v1386 = vsel %vm317, %v1384, %v1385
      %v1387 = vsel %vm362, %v1381, %v1386
      %1390 = vst.msk [vmem:[#allocation4] sm:$0xff] %vm296, %v1387
      %1391 = vst.msk [vmem:[#allocation4 + $0x8] sm:$0xf] %vm298, %v1383
      %1392 = vrot.lane.b32.xlu0 %v1376, 112
      %v1393 = vpop.permute.xlu0 %1392
      %1395 = vst.msk [vmem:[#allocation4] sm:$0xf] %vm298, %v1393
      %1396 = vrot.lane.b32.xlu0 %v1377, 114
      %v1397 = vpop.permute.xlu0 %1396
      %1399 = vst.msk [vmem:[#allocation4 + $0x8] sm:$0xf] %vm305, %v1397
      %v1400 = vld [vmem:[#allocation4] sm:$0xff]
      %v1401 = vld [vmem:[#allocation4 + $0x8] sm:$0xf]
      %1404 = vrot.lane.b32.xlu0 %v1400, 126
      %v1405 = vpop.permute.xlu0 %1404
      %1406 = vrot.lane.b32.xlu0 %v1401, 126
      %v1407 = vpop.permute.xlu0 %1406
      %v1408 = vrot.slane %v1405, 4
      %v1409 = vrot.slane %v1407, 4
      %v1410 = vsel %vm317, %v1408, %v1409
      %v1411 = vsel %vm319, %v1405, %v1410
      %v1413 = vsel %vm253, %v1411, %v1400
      %v1415 = vcombine.low %v1413, %v1413
      %1417 = vst [vmem:[#allocation2 + $0x10] sm:$0xf0] %v1415
      %1418 = vst [vmem:[#allocation2 + $0x18] sm:$0xf0] %v1413
      %v1419 = vcombine.high %v1376, %v1376
      %1420 = vrot.lane.b32.xlu0 %v1419, 112
      %v1421 = vpop.permute.xlu0 %1420
      %1422 = vrot.lane.b32.xlu0 %v1377, 112
      %v1423 = vpop.permute.xlu0 %1422
      %v1424 = vsel %vm400, %v1393, %v1421
      %v1425 = vsel %vm400, %v1421, %v1423
      %1428 = vst [vmem:[#allocation2 + $0x20] sm:$0xf] %v1424
      %1429 = vst [vmem:[#allocation2 + $0x28] sm:$0xf] %v1425
      %v1430 = vld [vmem:[#allocation4] sm:$0xff]
      %v1431 = vld [vmem:[#allocation4 + $0x8] sm:$0xf]
      %1434 = vrot.lane.b32.xlu0 %v1430, 126
      %v1435 = vpop.permute.xlu0 %1434
      %1436 = vrot.lane.b32.xlu0 %v1431, 126
      %v1437 = vpop.permute.xlu0 %1436
      %v1438 = vrot.slane %v1435, 4
      %v1439 = vrot.slane %v1437, 4
      %v1440 = vsel %vm317, %v1438, %v1439
      %v1441 = vsel %vm319, %v1435, %v1440
      %v1443 = vsel %vm256, %v1430, %v1441
      %v1445 = vcombine.low %v1443, %v1443
      %1447 = vst [vmem:[#allocation2 + $0x20] sm:$0xf0] %v1445
      %1448 = vst [vmem:[#allocation2 + $0x28] sm:$0xf0] %v1443
      %v1449 = vld [vmem:[#allocation3] sm:$0xff]
      %v1450 = vld [vmem:[#allocation3 + $0x8] sm:$0xf]
      %1453 = vrot.lane.b32.xlu0 %v1449, 97
      %v1454 = vpop.permute.xlu0 %1453
      %1455 = vrot.lane.b32.xlu0 %v1450, 97
      %v1456 = vpop.permute.xlu0 %1455
      %v1457 = vrot.slane %v1454, 4
      %v1458 = vrot.slane %v1456, 4
      %v1459 = vsel %vm317, %v1457, %v1458
      %v1460 = vsel %vm437, %v1454, %v1459
      %1463 = vst.msk [vmem:[#allocation4] sm:$0xff] %vm296, %v1460
      %1464 = vst.msk [vmem:[#allocation4 + $0x8] sm:$0xf] %vm298, %v1456
      %1465 = vrot.lane.b32.xlu0 %v1449, 96
      %v1466 = vpop.permute.xlu0 %1465
      %1468 = vst.msk [vmem:[#allocation4] sm:$0xf] %vm298, %v1466
      %1469 = vrot.lane.b32.xlu0 %v1450, 98
      %v1470 = vpop.permute.xlu0 %1469
      %1472 = vst.msk [vmem:[#allocation4 + $0x8] sm:$0xf] %vm305, %v1470
      %v1473 = vld [vmem:[#allocation4] sm:$0xff]
      %v1474 = vld [vmem:[#allocation4 + $0x8] sm:$0xf]
      %1477 = vrot.lane.b32.xlu0 %v1473, 126
      %v1478 = vpop.permute.xlu0 %1477
      %1479 = vrot.lane.b32.xlu0 %v1474, 126
      %v1480 = vpop.permute.xlu0 %1479
      %v1481 = vrot.slane %v1478, 4
      %v1482 = vrot.slane %v1480, 4
      %v1483 = vsel %vm317, %v1481, %v1482
      %v1484 = vsel %vm319, %v1478, %v1483
      %v1486 = vsel %vm253, %v1484, %v1473
      %v1488 = vcombine.high %v1486, %v1486
      %1490 = vst [vmem:[#allocation2 + $0x30] sm:$0xf] %v1486
      %1491 = vst [vmem:[#allocation2 + $0x38] sm:$0xf] %v1488
      %v1492 = vcombine.low %v1449, %v1449
      %v1493 = vcombine.low %v1450, %v1450
      %1494 = vrot.lane.b32.xlu0 %v1492, 96
      %v1495 = vpop.permute.xlu0 %1494
      %1496 = vrot.lane.b32.xlu0 %v1493, 96
      %v1497 = vpop.permute.xlu0 %1496
      %v1498 = vsel %vm476, %v1495, %v1466
      %v1499 = vsel %vm476, %v1466, %v1497
      %1502 = vst [vmem:[#allocation2 + $0x30] sm:$0xf0] %v1498
      %1503 = vst [vmem:[#allocation2 + $0x38] sm:$0xf0] %v1499
      %v1504 = vld [vmem:[#allocation4] sm:$0xff]
      %v1505 = vld [vmem:[#allocation4 + $0x8] sm:$0xf]
      %1508 = vrot.lane.b32.xlu0 %v1504, 126
      %v1509 = vpop.permute.xlu0 %1508
      %1510 = vrot.lane.b32.xlu0 %v1505, 126
      %v1511 = vpop.permute.xlu0 %1510
      %v1512 = vrot.slane %v1509, 4
      %v1513 = vrot.slane %v1511, 4
      %v1514 = vsel %vm317, %v1512, %v1513
      %v1515 = vsel %vm319, %v1509, %v1514
      %v1517 = vsel %vm256, %v1504, %v1515
      %v1519 = vcombine.high %v1517, %v1517
      %1521 = vst [vmem:[#allocation2 + $0x40] sm:$0xf] %v1517
      %1522 = vst [vmem:[#allocation2 + $0x48] sm:$0xf] %v1519
      %v1523 = vld [vmem:[%s5] sm:$0xf]
      %v1524 = vld [vmem:[#allocation2] sm:$0xff]
      %v1525 = vld [vmem:[#allocation2 + $0x8] sm:$0xff]
      %v1526 = vld [vmem:[#allocation2 + $0x10] sm:$0xff]
      %v1527 = vld [vmem:[#allocation2 + $0x18] sm:$0xff]
      %v1528 = vld [vmem:[#allocation2 + $0x20] sm:$0xff]
      %v1529 = vld [vmem:[#allocation2 + $0x28] sm:$0xff]
      %v1530 = vld [vmem:[#allocation2 + $0x30] sm:$0xff]
      %v1531 = vld [vmem:[#allocation2 + $0x38] sm:$0xff]
      %v1532 = vld [vmem:[#allocation2 + $0x40] sm:$0xf]
      %v1533 = vld [vmem:[#allocation2 + $0x48] sm:$0xf]
      %v1535 = vsel %vm513, %v1523, 0
      %v1538 = vsel %vm317, %v1532, 0
      %v1541 = vsel %vm317, %v1533, 0
      %1543 = vmatprep.subr.mxu0 %v1525
      %1544 = vmatpush1.msra.mxu0 %v1524
      %1545 = vmatprep.subr.mxu0 %v1527
      %1546 = vmatpush1.msra.mxu0 %v1526
      %1547 = vmatprep.subr.mxu0 %v1529
      %1548 = vmatpush1.msra.mxu0 %v1528
      %1549 = vmatprep.subr.mxu0 %v1531
      %1550 = vmatpush1.msra.mxu0 %v1530
      %1551 = vmatprep.subr.mxu0 %v1541
      %1552 = vmatpush1.msra.mxu0 %v1538
      %1553 = vmatprep.subr.mxu0 0.0
      %1554 = vmatpush1.msra.mxu0 0.0
      %1555 = vmatprep.subr.mxu0 0.0
      %1556 = vmatpush1.msra.mxu0 0.0
      %1557 = vmatprep.subr.mxu0 0.0
      %1558 = vmatpush1.msra.mxu0 0.0
      %1559 = vmatprep.subr.mxu0 0.0
      %1560 = vmatpush1.msra.mxu0 0.0
      %1561 = vmatprep.subr.mxu0 0.0
      %1562 = vmatpush1.msra.mxu0 0.0
      %1563 = vmatprep.subr.mxu0 0.0
      %1564 = vmatpush1.msra.mxu0 0.0
      %1565 = vmatprep.subr.mxu0 0.0
      %1566 = vmatpush1.msra.mxu0 0.0
      %1567 = vmatprep.subr.mxu0 0.0
      %1568 = vmatpush1.msra.mxu0 0.0
      %1569 = vmatprep.subr.mxu0 0.0
      %1570 = vmatpush1.msra.mxu0 0.0
      %1571 = vmatprep.subr.mxu0 0.0
      %1572 = vmatpush1.msra.mxu0 0.0
      %1573 = vmatprep.subr.mxu0 0.0
      %1574 = vmatpush1.msra.mxu0 0.0
      %1575 = vmatprep.subr.mxu0 0.0
      %1576 = vmatpush1.msra.mxu0 0.0
      %1577 = vmatprep.subr.mxu0 0.0
      %1578 = vmatpush1.msra.mxu0 0.0
      %1579 = vmatprep.subr.mxu0 0.0
      %1580 = vmatpush1.msra.mxu0 0.0
      %1581 = vmatprep.subr.mxu0 0.0
      %1582 = vmatpush1.msra.mxu0 0.0
      %1583 = vmatprep.subr.mxu0 0.0
      %1584 = vmatpush1.msra.mxu0 0.0
      %1585 = vmatprep.subr.mxu0 0.0
      %1586 = vmatpush1.msra.mxu0 0.0
      %1587 = vmatprep.subr.mxu0 0.0
      %1588 = vmatpush1.msra.mxu0 0.0
      %1589 = vmatprep.subr.mxu0 0.0
      %1590 = vmatpush1.msra.mxu0 0.0
      %1591 = vmatprep.subr.mxu0 0.0
      %1592 = vmatpush1.msra.mxu0 0.0
      %1593 = vmatprep.subr.mxu0 0.0
      %1594 = vmatpush1.msra.mxu0 0.0
      %1595 = vmatprep.subr.mxu0 0.0
      %1596 = vmatpush1.msra.mxu0 0.0
      %1597 = vmatprep.subr.mxu0 0.0
      %1598 = vmatpush1.msra.mxu0 0.0
      %1599 = vmatprep.subr.mxu0 0.0
      %1600 = vmatpush1.msra.mxu0 0.0
      %1601 = vmatprep.subr.mxu0 0.0
      %1602 = vmatpush1.msra.mxu0 0.0
      %1603 = vmatprep.subr.mxu0 0.0
      %1604 = vmatpush1.msra.mxu0 0.0
      %1605 = vmatprep.subr.mxu0 0.0
      %1606 = vmatpush1.msra.mxu0 0.0
      %1607 = vmatprep.mubr.f32.mxu0 0.0
      %1608 = vmatmul.mubr.f32.gmra.mrb[0].mxu0 %v1535
      %v1609 = vpop.f32.mrb[0].mxu0
      %v1610 = vadd.f32 0.0, %v1609
      %v1611 = vpop.f32.mrb[0].mxu0
      %v1612 = vadd.f32 0.0, %v1611
      %1613 = vdwg.mxu0
      %v1614 = vsel %vm317, %v1610, 0.0
      %v1615 = vsel %vm317, %v1612, 0.0
      %v1616 = vadd.f32 %v1614, %v1615
      %1617 = vadd.xlane.f32.xlu0 %v1616
      %v1618 = vpop.xlane.xlu0 %1617
      %v1619 = vmul.f32 %v1610, %v1610
      %v1620 = vmul.f32 %v1612, %v1612
      %v1621 = vsel %vm317, %v1619, 0.0
      %v1622 = vsel %vm317, %v1620, 0.0
      %v1623 = vadd.f32 %v1621, %v1622
      %1624 = vadd.xlane.f32.xlu0 %v1623
      %v1625 = vpop.xlane.xlu0 %1624
      %v1626 = vmul.f32 %v1618, 0.00390625
      %v1627 = vmul.f32 %v1625, 0.00390625
      %v1628 = vmul.f32 %v1626, %v1626
      %v1629 = vsub.f32 %v1627, %v1628
      %v1630 = vmax.f32 %v1629, 0.0
      %v1631 = vsub.f32 %v1610, %v1626
      %v1632 = vsub.f32 %v1612, %v1626
      %v1633 = vadd.f32 %v1630, 1e-05
      %v1634 = vrsqrt.pop %v1633
      %v1635 = vmul.f32 %v1631, %v1634
      %v1636 = vmul.f32 %v1632, %v1634
      %v1639 = vrot.slane %v1635, 4
      %v1640 = vrot.slane %v1636, 4
      %v1643 = vadd.f32 %v257, %v1639
      %v1644 = vadd.f32 %v258, %v1640
      %1645 = vst [vmem:[%s251] sm:$0xf] %v957
      %1646 = vst [vmem:[%s251 + $0x8] sm:$0xf] %v958
      %1647 = vst [vmem:[%s251] sm:$0xf0] %v1643
      %1648 = vst [vmem:[%s251 + $0x8] sm:$0xf0] %v1644
      %p1649 = scmp.lt.s32.totalorder %s17, 1
      %s1650 = scalar_select %p1649, %s17, 1
      %s1651 = smul.addr %s1650, 2
      %s1652 = smul.addr %s1651, 8
      %s1653 = scalar_lea.vmem %s6, %s1652
      // Predicated region
      $region45: #{reversible_resnet_block.1} parent=43 // pred_check
        %p1654 = pneg %p166
      $region46: #{reversible_resnet_block.1} parent=43 // pred_check_branch
        %1656 = sbr.rel (%p1654) target = $region48
      $region47: #{reversible_resnet_block.1} parent=43 // pred_region
        _
      $region48: #{reversible_resnet_block.1} parent=43 // pred_fallthru
        _
    $region44: #{reversible_resnet_block.1} parent=5 // pred_fallthru
      _
    %p1657 = scmp.le.s32.totalorder 2, %s12
    // Predicated region
    $region49: #{reversible_resnet_block.1} parent=5 // pred_check
      %p1658 = pneg %p1657
    $region50: #{reversible_resnet_block.1} parent=5 // pred_check_branch
      %1660 = sbr.rel (%p1658) target = $region52
    $region51: #{reversible_resnet_block.1} parent=5 // pred_region
      %s1661 = ssub.s32 %s12, 2
      // Predicated region
      $region53: #{reversible_resnet_block.1} parent=51 // pred_check
        %p1662 = pneg %p172
      $region54: #{reversible_resnet_block.1} parent=51 // pred_check_branch
        %1664 = sbr.rel (%p1662) target = $region56
      $region55: #{reversible_resnet_block.1} parent=51 // pred_region
        %p1665 = scmp.lt.s32.totalorder %s18, 1
        %s1666 = scalar_select %p1665, %s18, 1
        %s1667 = smul.addr %s1666, 2
        %s1668 = smul.addr %s1667, 8
        %s1669 = scalar_lea.vmem %s6, %s1668
      $region56: #{reversible_resnet_block.1} parent=51 // pred_fallthru
        _
    $region52: #{reversible_resnet_block.1} parent=5 // pred_fallthru
      _
  $region6: #{reversible_resnet_block.1} parent=0 // loop_footer
    %s16 = sadd.s32 1, %s12
  $region7: #{reversible_resnet_block.1} parent=0 // loop_footer_branch
    %11 = sbr.rel target = $region3
  $region8: #{reversible_resnet_block.1} parent=0 // loop_exit
    _

</llo_original>
